<compile_context>
chip_gen: v7x
topology: tpu7x:2x2x1
jax: 0.10.0
libtpu: 0.0.40
codegen_flags: <defaults>
</compile_context>

<pallas_src>
import functools
import math

import jax
import jax.numpy as jnp
from jax import lax
from jax.experimental import pallas as pl
from jax.experimental.pallas import tpu as pltpu

NEG_SLOPE = 0.2
ACT_SCALE = math.sqrt(2.0)
BLUR_KERNEL = (1, 3, 3, 1)


# ---------------------------------------------------------------------------
# Small helpers
# ---------------------------------------------------------------------------
def _pad_axis(a, axis, multiple):
    pad = (-a.shape[axis]) % multiple
    if pad == 0:
        return a
    widths = [(0, 0)] * a.ndim
    widths[axis] = (0, pad)
    return jnp.pad(a, widths)


def _pick_tile(dim, preferred, granularity):
    t = min(preferred, dim)
    t -= t % granularity
    while t >= granularity:
        if dim % t == 0:
            return t
        t -= granularity
    return dim  # full-extent block


# ---------------------------------------------------------------------------
# Pallas kernel 1: tiled matmul with fused bias + leaky_relu epilogue
# (used by the 1x1 RGB stem and the final 4x4 head, both of which are pure matmuls)
# ---------------------------------------------------------------------------
def _fused_matmul_kernel(x_ref, w_ref, b_ref, o_ref, acc_ref, *,
                         n_k, activate, negative_slope):
    kk = pl.program_id(2)

    @pl.when(kk == 0)
    def _init():
        # Accumulator starts at the (already sqrt(2)-scaled) bias -> no epilogue add.
        acc_ref[...] = jnp.broadcast_to(b_ref[...], acc_ref.shape)

    tk = x_ref.shape[1]
    if tk < 8:
        # Tiny contraction dim (K=3 RGB stem): a few VPU outer-product updates instead
        # of zero-padding K to 128 for the MXU (avoids a ~42x patch inflation in HBM).
        xv = x_ref[...].astype(jnp.float32)
        wv = w_ref[...].astype(jnp.float32)
        acc = acc_ref[...]
        for c in range(tk):
            acc = acc + xv[:, c:c + 1] * wv[c:c + 1, :]
        acc_ref[...] = acc
    else:
        acc_ref[...] += jnp.dot(x_ref[...], w_ref[...],
                                preferred_element_type=jnp.float32)

    @pl.when(kk == n_k - 1)
    def _epilogue():
        y = acc_ref[...]
        if activate:
            # leaky_relu(y, ns) == max(y, ns*y) for 0 < ns < 1; sqrt(2) folded into w/b.
            y = jnp.maximum(y, negative_slope * y)
        o_ref[...] = y.astype(o_ref.dtype)


def fused_matmul(x, w, b, *, activate, out_dtype, tm=512, tk=512, tn=1024):
    """(M,K) @ (K,N) [+ bias] [-> leaky_relu] on the MXU, bf16 operands / f32 acc."""
    m0, k0 = x.shape
    kw_, n0 = w.shape
    assert k0 == kw_
    x = x.astype(jnp.bfloat16)
    w = w.astype(jnp.bfloat16)
    if b is None:
        b = jnp.zeros((1, n0), jnp.float32)
    else:
        b = jnp.asarray(b, jnp.float32).reshape(1, n0)

    # Pad M (sublane, 16 for bf16) and N (lane, 128).  K is either already 128-aligned
    # or kept as a single full-extent block (e.g. the K=3 stem) - never zero-padded.
    x = _pad_axis(x, 0, 16)
    w = _pad_axis(w, 1, 128)
    b = _pad_axis(b, 1, 128)
    m, k = x.shape
    n = w.shape[1]

    tm = _pick_tile(m, tm, 16)
    tn = _pick_tile(n, tn, 128)
    if k % 128 == 0:
        tk = _pick_tile(k, tk, 128)
    else:
        tk = k
    n_k = k // tk

    kernel = functools.partial(_fused_matmul_kernel, n_k=n_k, activate=activate,
                               negative_slope=NEG_SLOPE)
    cost = pl.CostEstimate(
        flops=2 * m * k * n,
        transcendentals=0,
        bytes_accessed=(m * k + k * n) * 2 + m * n * jnp.dtype(out_dtype).itemsize)

    out = pl.pallas_call(
        kernel,
        out_shape=jax.ShapeDtypeStruct((m, n), out_dtype),
        grid_spec=pltpu.PrefetchScalarGridSpec(
            num_scalar_prefetch=0,
            grid=(m // tm, n // tn, n_k),
            in_specs=[
                pl.BlockSpec((tm, tk), lambda i, j, kk: (i, kk)),
                pl.BlockSpec((tk, tn), lambda i, j, kk: (kk, j)),
                pl.BlockSpec((1, tn), lambda i, j, kk: (0, j)),
            ],
            out_specs=pl.BlockSpec((tm, tn), lambda i, j, kk: (i, j)),
            scratch_shapes=[pltpu.VMEM((tm, tn), jnp.float32)],
        ),
        compiler_params=pltpu.CompilerParams(
            dimension_semantics=("parallel", "parallel", "arbitrary")),
        cost_estimate=cost,
    )(x, w, b)

    if (m, n) != (m0, n0):
        out = out[:m0, :n0]
    return out


# ---------------------------------------------------------------------------
# Pallas kernel 2: direct NHWC stride-1 "valid" convolution, fused bias + leaky_relu
#   x  : (N, HP, WP, C)   already zero-padded (and space-to-depth'd for stride-2 convs)
#   w  : (kh, kw, C, Cout) eq-lr / activation scales folded in
#   out: (N, HP-kh+1, WP-kw+1, Cout)
# Grid = (Cout blocks, N, output rows); the kh needed input rows arrive as kh separate
# size-1-H blocks picked by index maps, all kh*kw taps are unrolled in-kernel.
# ---------------------------------------------------------------------------
def _direct_conv_kernel(*refs, kh, kw, ow, activate, negative_slope):
    x_rows = refs[:kh]
    w_ref, b_ref = refs[kh], refs[kh + 1]
    o_ref, acc_ref = refs[kh + 2], refs[kh + 3]

    acc_ref[...] = jnp.broadcast_to(b_ref[...], acc_ref.shape)
    for ky in range(kh):
        for kx in range(kw):
            lhs = x_rows[ky][0, 0, pl.ds(kx, ow), :]          # (OW, C) bf16
            acc_ref[...] += jnp.dot(lhs, w_ref[ky, kx],
                                    preferred_element_type=jnp.float32)
    y = acc_ref[...]
    if activate:
        y = jnp.maximum(y, negative_slope * y)
    o_ref[0, 0] = y.astype(o_ref.dtype)


def _pick_cout_block(kh, kw, cc, cout, budget=4 << 20):
    """Largest Cout block whose bf16 weight tile fits a ~4 MiB VMEM budget."""
    per_co = kh * kw * cc * 2
    if cout <= 128 or cout * per_co <= budget:
        return cout
    for co in (512, 256, 128):
        if co <= cout and cout % co == 0 and co * per_co <= budget:
            return co
    return 128 if cout % 128 == 0 else cout


def direct_conv(xp, w, b, *, activate):
    n, hp, wp, cc = xp.shape
    kh, kw, cc_w, cout = w.shape
    assert cc == cc_w
    oh, ow = hp - kh + 1, wp - kw + 1

    xp = xp.astype(jnp.bfloat16)
    w = w.astype(jnp.bfloat16)
    if b is None:
        b2 = jnp.zeros((1, cout), jnp.float32)
    else:
        b2 = jnp.asarray(b, jnp.float32).reshape(1, cout)

    co_blk = _pick_cout_block(kh, kw, cc, cout)
    n_co = cout // co_blk

    kernel = functools.partial(_direct_conv_kernel, kh=kh, kw=kw, ow=ow,
                               activate=activate, negative_slope=NEG_SLOPE)

    in_specs = []
    for a in range(kh):  # kh size-1-H row windows of the same padded input
        in_specs.append(pl.BlockSpec((1, 1, wp, cc),
                                     lambda co, ni, i, a=a: (ni, i + a, 0, 0)))
    in_specs.append(pl.BlockSpec((kh, kw, cc, co_blk), lambda co, ni, i: (0, 0, 0, co)))
    in_specs.append(pl.BlockSpec((1, co_blk), lambda co, ni, i: (0, co)))
    out_spec = pl.BlockSpec((1, 1, ow, co_blk), lambda co, ni, i: (ni, i, 0, co))

    cost = pl.CostEstimate(
        flops=2 * n * oh * ow * kh * kw * cc * cout,
        transcendentals=0,
        bytes_accessed=xp.size * 2 * kh + w.size * 2 + n * oh * ow * cout * 2)

    # TODO(synk): one output row per grid step under-utilises the MXU for the tiny
    # low-resolution / 512-channel layers; a multi-row M block needs a manual halo DMA.
    return pl.pallas_call(
        kernel,
        out_shape=jax.ShapeDtypeStruct((n, oh, ow, cout), jnp.bfloat16),
        grid_spec=pltpu.PrefetchScalarGridSpec(
            num_scalar_prefetch=0,
            grid=(n_co, n, oh),
            in_specs=in_specs,
            out_specs=out_spec,
            scratch_shapes=[pltpu.VMEM((ow, co_blk), jnp.float32)],
        ),
        compiler_params=pltpu.CompilerParams(
            dimension_semantics=("parallel", "parallel", "arbitrary")),
        cost_estimate=cost,
    )(*([xp] * kh), w, b2)


# ---------------------------------------------------------------------------
# Host-side weight / layout preparation (blur folding, NHWC, space-to-depth)
# ---------------------------------------------------------------------------
def make_blur_kernel(k):
    k = jnp.asarray(k, jnp.float32)
    if k.ndim == 1:
        k = k[None, :] * k[:, None]
    return k / jnp.sum(k)


def compose_with_blur(w_oihw, blur2d):
    """Fold upfirdn2d(blur, pad) followed by F.conv2d(w) into one correlation kernel.

    Result We[m,n] = sum_{t,u} w[t,u] * flip(blur)[m-t, n-u]; the composed conv uses the
    *blur's* padding and the original conv's stride.
    """
    kf = jnp.flip(blur2d, (0, 1))
    co, ci, kh, kw = w_oihw.shape
    bh, bw = kf.shape
    out = jnp.zeros((co, ci, kh + bh - 1, kw + bw - 1), w_oihw.dtype)
    for t in range(kh):
        for u in range(kw):
            out = out.at[:, :, t:t + bh, u:u + bw].add(
                w_oihw[:, :, t, u][..., None, None] * kf)
    return out


def _nhwc_weight(w_oihw):
    return jnp.transpose(w_oihw, (2, 3, 1, 0))            # (kh, kw, Cin, Cout)


def _space_to_depth_weight(w_nhwc):
    kh, kw, ci, co = w_nhwc.shape
    w = w_nhwc.reshape(kh // 2, 2, kw // 2, 2, ci, co)
    w = w.transpose(0, 2, 1, 3, 4, 5)                      # (a, b, qh, qw, ci, co)
    return w.reshape(kh // 2, kw // 2, 4 * ci, co)


def _space_to_depth(x):
    n, hp, wp, c = x.shape
    x = x.reshape(n, hp // 2, 2, wp // 2, 2, c)
    x = x.transpose(0, 1, 3, 2, 4, 5)                      # (n, h, w, qh, qw, c)
    return x.reshape(n, hp // 2, wp // 2, 4 * c)


def _pad_hw(x, p0, p1):
    return jnp.pad(x, ((0, 0), (p0, p1), (p0, p1), (0, 0)))


# ---------------------------------------------------------------------------
# EncoderApp forward (Pallas path, NHWC / bf16)
# ---------------------------------------------------------------------------
def encoder_forward_pallas(params, x):
    blur2d = make_blur_kernel(BLUR_KERNEL)
    h = jnp.transpose(x, (0, 2, 3, 1)).astype(jnp.bfloat16)   # NCHW -> NHWC, bf16
    for layer in params:
        if layer["kind"] == "stem":
            # ConvLayer(3, C, 1): 1x1 EqualConv (no conv bias) + FusedLeakyReLU.
            w = layer["w"]
            out_c, in_c = w.shape[0], w.shape[1]
            eq = 1.0 / math.sqrt(in_c * 1)
            w2d = (w.reshape(out_c, in_c) * (eq * ACT_SCALE)).T    # (3, C)
            n, hh, ww, _ = h.shape
            y = fused_matmul(h.reshape(n * hh * ww, in_c), w2d,
                             layer["b"] * ACT_SCALE,
                             activate=True, out_dtype=jnp.bfloat16)
            h = y.reshape(n, hh, ww, out_c)
        elif layer["kind"] == "resblock":
            in_c = layer["conv1_w"].shape[1]
            eq3 = 1.0 / math.sqrt(in_c * 9)
            eq1 = 1.0 / math.sqrt(in_c * 1)
            # conv1: 3x3, stride 1, pad 1, + FusedLeakyReLU (sqrt(2) folded).
            w1 = _nhwc_weight(layer["conv1_w"] * (eq3 * ACT_SCALE))
            c1 = direct_conv(_pad_hw(h, 1, 1), w1,
                             layer["conv1_b"] * ACT_SCALE, activate=True)
            # conv2: blur(pad 2,2) + 3x3/s2  ->  6x6/s2 conv (pad 2,2)
            #        -> space-to-depth -> 3x3 stride-1 conv over 4*Cin channels.
            w2_eff = compose_with_blur(layer["conv2_w"] * (eq3 * ACT_SCALE), blur2d)
            w2 = _space_to_depth_weight(_nhwc_weight(w2_eff))
            out = direct_conv(_space_to_depth(_pad_hw(c1, 2, 2)), w2,
                              layer["conv2_b"] * ACT_SCALE, activate=True)
            # skip: blur(pad 1,1) + 1x1/s2  ->  4x4/s2 conv (pad 1,1)
            #       -> space-to-depth -> 2x2 stride-1 conv, no bias / activation.
            ws_eff = compose_with_blur(layer["skip_w"] * eq1, blur2d)
            ws = _space_to_depth_weight(_nhwc_weight(ws_eff))
            skip = direct_conv(_space_to_depth(_pad_hw(h, 1, 1)), ws,
                               None, activate=False)
            h = ((out + skip) * (1.0 / math.sqrt(2.0))).astype(jnp.bfloat16)
        else:
            # Final EqualConv2d(in, w_dim, 4, pad 0, no bias): whole-image matmul.
            w = layer["w"]
            w_dim, in_c = w.shape[0], w.shape[1]
            eq = 1.0 / math.sqrt(in_c * 16)
            w2d = _nhwc_weight(w * eq).reshape(16 * in_c, w_dim)
            n = h.shape[0]
            h = fused_matmul(h.reshape(n, -1), w2d, None,
                             activate=False, out_dtype=jnp.float32)
    return h            # (N, w_dim)


# ---------------------------------------------------------------------------
# Pure-JAX f32 NCHW reference (exact torch semantics, for the correctness check)
# ---------------------------------------------------------------------------
def blur_ref(x, kernel2d, pad):
    pad0, pad1 = pad
    n, c, _, _ = x.shape
    x = jnp.pad(x, ((0, 0), (0, 0), (pad0, pad1), (pad0, pad1)))
    kh, kw = kernel2d.shape
    wk = jnp.flip(kernel2d, (0, 1)).reshape(1, 1, kh, kw)
    xr = x.reshape(n * c, 1, x.shape[2], x.shape[3])
    y = lax.conv_general_dilated(xr, wk, window_strides=(1, 1), padding="VALID",
                                 dimension_numbers=("NCHW", "OIHW", "NCHW"))
    return y.reshape(n, c, y.shape[2], y.shape[3])


def equal_conv2d_ref(x, weight, bias, stride, padding, activate):
    out_c, in_c, kh, kw = weight.shape
    eq_scale = 1.0 / math.sqrt(in_c * kh * kw)
    y = lax.conv_general_dilated(
        x, weight * eq_scale, window_strides=(stride, stride),
        padding=((padding, padding), (padding, padding)),
        dimension_numbers=("NCHW", "OIHW", "NCHW"),
        precision=lax.Precision.HIGHEST)
    if activate:
        y = y + bias.reshape(1, -1, 1, 1)
        y = jnp.where(y >= 0, y, NEG_SLOPE * y) * ACT_SCALE
    return y


def _blur_pad(kernel_size, blur_len=4, factor=2):
    p = blur_len - factor + (kernel_size - 1)
    return ((p + 1) // 2, p // 2)


def encoder_forward_ref(params, x):
    blur_k = make_blur_kernel(BLUR_KERNEL)
    h = x
    for layer in params:
        if layer["kind"] == "stem":
            h = equal_conv2d_ref(h, layer["w"], layer["b"], 1, 0, True)
        elif layer["kind"] == "resblock":
            out = equal_conv2d_ref(h, layer["conv1_w"], layer["conv1_b"], 1, 1, True)
            out = blur_ref(out, blur_k, _blur_pad(3))
            out = equal_conv2d_ref(out, layer["conv2_w"], layer["conv2_b"], 2, 0, True)
            skip = blur_ref(h, blur_k, _blur_pad(1))
            skip = equal_conv2d_ref(skip, layer["skip_w"], None, 2, 0, False)
            h = (out + skip) / math.sqrt(2.0)
        else:
            h = equal_conv2d_ref(h, layer["w"], None, 1, 0, False)
    return h.reshape(h.shape[0], h.shape[1])


# ---------------------------------------------------------------------------
# EncoderApp parameters (torch OIHW layout, randomised to exercise every path)
# ---------------------------------------------------------------------------
CHANNELS = {4: 512, 8: 512, 16: 512, 32: 512, 64: 256, 128: 128,
            256: 64, 512: 32, 1024: 16}


def init_encoder_params(key, size, w_dim=512):
    log_size = int(math.log2(size))
    keys = iter(jax.random.split(key, 128))

    def conv_w(out_c, in_c, k):
        return jax.random.normal(next(keys), (out_c, in_c, k, k), jnp.float32)

    def act_bias(c):   # FusedLeakyReLU bias (zero-init in torch; randomised here)
        return 0.1 * jax.random.normal(next(keys), (c,), jnp.float32)

    params = []
    c0 = CHANNELS[size]
    params.append({"kind": "stem", "w": conv_w(c0, 3, 1), "b": act_bias(c0)})
    in_c = c0
    for i in range(log_size, 2, -1):
        out_c = CHANNELS[2 ** (i - 1)]
        params.append({
            "kind": "resblock",
            "conv1_w": conv_w(in_c, in_c, 3), "conv1_b": act_bias(in_c),
            "conv2_w": conv_w(out_c, in_c, 3), "conv2_b": act_bias(out_c),
            "skip_w": conv_w(out_c, in_c, 1),
        })
        in_c = out_c
    params.append({"kind": "final", "w": conv_w(w_dim, in_c, 4)})
    return params


if __name__ == "__main__":
    key = jax.random.PRNGKey(0)
    k_x, k_p = jax.random.split(key)

    size = 8      # smallest EncoderApp resolution: stem + 1 ResBlock + 4x4 head
    x = jax.random.normal(k_x, (2, 3, size, size), jnp.float32)
    params = init_encoder_params(k_p, size, w_dim=512)

    out = jax.block_until_ready(encoder_forward_pallas(params, x))
    ref = jax.block_until_ready(encoder_forward_ref(params, x))

    assert out.shape == (2, 512) and out.dtype == jnp.float32
    rel_err = float(jnp.max(jnp.abs(out - ref)) / (jnp.max(jnp.abs(ref)) + 1e-8))
    assert rel_err < 5e-2, f"mismatch vs reference: rel_err={rel_err}"
    print("KERNEL_OK")
</pallas_src>

<mosaic_0001>
module attributes {stable_mosaic.version = 11 : i64} {
  func.func @_fused_matmul_kernel(%arg0: i32, %arg1: i32, %arg2: i32, %arg3: memref<128x3xbf16, #tpu.memory_space<vmem>>, %arg4: memref<3x512xbf16, #tpu.memory_space<vmem>>, %arg5: memref<1x512xf32, #tpu.memory_space<vmem>>, %arg6: memref<128x512xbf16, #tpu.memory_space<vmem>>, %arg7: memref<128x512xf32, #tpu.memory_space<vmem>>) attributes {dimension_semantics = [#tpu.dimension_semantics<parallel>, #tpu.dimension_semantics<parallel>, #tpu.dimension_semantics<arbitrary>], iteration_bounds = array<i64: 1, 1, 1>, scalar_prefetch = 0 : i64, scratch_operands = 1 : i64, tpu.core_type = #tpu.core_type<tc>, window_params = [{transform_indices = @transform_0, window_bounds = array<i64: 128, 3>}, {transform_indices = @transform_1, window_bounds = array<i64: 3, 512>}, {transform_indices = @transform_2, window_bounds = array<i64: 1, 512>}, {transform_indices = @transform_3, window_bounds = array<i64: 128, 512>}]} {
    %c0_i32 = arith.constant 0 : i32
    %0 = arith.cmpi eq, %arg2, %c0_i32 : i32
    %1 = arith.extui %0 : i1 to i32
    %c0_i32_0 = arith.constant 0 : i32
    %2 = arith.cmpi ne, %1, %c0_i32_0 : i32
    scf.if %2 {
      %c0_10 = arith.constant 0 : index
      %c0_11 = arith.constant 0 : index
      %30 = vector.load %arg5[%c0_10, %c0_11] : memref<1x512xf32, #tpu.memory_space<vmem>>, vector<1x512xf32>
      %31 = vector.shape_cast %30 : vector<1x512xf32> to vector<1x512xf32>
      %32 = vector.broadcast %31 : vector<1x512xf32> to vector<128x512xf32>
      %c0_12 = arith.constant 0 : index
      %c0_13 = arith.constant 0 : index
      %33 = vector.load %arg7[%c0_12, %c0_13] : memref<128x512xf32, #tpu.memory_space<vmem>>, vector<128x512xf32>
      tpu.vector_store %arg7[%c0_12, %c0_13], %32 {strides = array<i32>} : memref<128x512xf32, #tpu.memory_space<vmem>>, vector<128x512xf32>,
    } else {
    }
    %c0 = arith.constant 0 : index
    %c0_1 = arith.constant 0 : index
    %3 = vector.load %arg3[%c0, %c0_1] : memref<128x3xbf16, #tpu.memory_space<vmem>>, vector<128x3xbf16>
    %4 = arith.extf %3 : vector<128x3xbf16> to vector<128x3xf32>
    %c0_2 = arith.constant 0 : index
    %c0_3 = arith.constant 0 : index
    %5 = vector.load %arg4[%c0_2, %c0_3] : memref<3x512xbf16, #tpu.memory_space<vmem>>, vector<3x512xbf16>
    %6 = arith.extf %5 : vector<3x512xbf16> to vector<3x512xf32>
    %c0_4 = arith.constant 0 : index
    %c0_5 = arith.constant 0 : index
    %7 = vector.load %arg7[%c0_4, %c0_5] : memref<128x512xf32, #tpu.memory_space<vmem>>, vector<128x512xf32>
    %8 = vector.extract_strided_slice %4 {offsets = [0, 0], sizes = [128, 1], strides = [1, 1]} : vector<128x3xf32> to vector<128x1xf32>
    %9 = vector.extract_strided_slice %6 {offsets = [0, 0], sizes = [1, 512], strides = [1, 1]} : vector<3x512xf32> to vector<1x512xf32>
    %10 = vector.broadcast %8 : vector<128x1xf32> to vector<128x512xf32>
    %11 = vector.broadcast %9 : vector<1x512xf32> to vector<128x512xf32>
    %12 = arith.mulf %10, %11 : vector<128x512xf32>
    %13 = arith.addf %7, %12 : vector<128x512xf32>
    %14 = vector.extract_strided_slice %4 {offsets = [0, 1], sizes = [128, 1], strides = [1, 1]} : vector<128x3xf32> to vector<128x1xf32>
    %15 = vector.extract_strided_slice %6 {offsets = [1, 0], sizes = [1, 512], strides = [1, 1]} : vector<3x512xf32> to vector<1x512xf32>
    %16 = vector.broadcast %14 : vector<128x1xf32> to vector<128x512xf32>
    %17 = vector.broadcast %15 : vector<1x512xf32> to vector<128x512xf32>
    %18 = arith.mulf %16, %17 : vector<128x512xf32>
    %19 = arith.addf %13, %18 : vector<128x512xf32>
    %20 = vector.extract_strided_slice %4 {offsets = [0, 2], sizes = [128, 1], strides = [1, 1]} : vector<128x3xf32> to vector<128x1xf32>
    %21 = vector.extract_strided_slice %6 {offsets = [2, 0], sizes = [1, 512], strides = [1, 1]} : vector<3x512xf32> to vector<1x512xf32>
    %22 = vector.broadcast %20 : vector<128x1xf32> to vector<128x512xf32>
    %23 = vector.broadcast %21 : vector<1x512xf32> to vector<128x512xf32>
    %24 = arith.mulf %22, %23 : vector<128x512xf32>
    %25 = arith.addf %19, %24 : vector<128x512xf32>
    %c0_6 = arith.constant 0 : index
    %c0_7 = arith.constant 0 : index
    %26 = vector.load %arg7[%c0_6, %c0_7] : memref<128x512xf32, #tpu.memory_space<vmem>>, vector<128x512xf32>
    tpu.vector_store %arg7[%c0_6, %c0_7], %25 {strides = array<i32>} : memref<128x512xf32, #tpu.memory_space<vmem>>, vector<128x512xf32>,
    %c0_i32_8 = arith.constant 0 : i32
    %27 = arith.cmpi eq, %arg2, %c0_i32_8 : i32
    %28 = arith.extui %27 : i1 to i32
    %c0_i32_9 = arith.constant 0 : i32
    %29 = arith.cmpi ne, %28, %c0_i32_9 : i32
    scf.if %29 {
      %c0_10 = arith.constant 0 : index
      %c0_11 = arith.constant 0 : index
      %30 = vector.load %arg7[%c0_10, %c0_11] : memref<128x512xf32, #tpu.memory_space<vmem>>, vector<128x512xf32>
      %cst = arith.constant 2.000000e-01 : f32
      %31 = vector.broadcast %cst : f32 to vector<128x512xf32>
      %32 = arith.mulf %31, %30 : vector<128x512xf32>
      %33 = arith.maximumf %30, %32 : vector<128x512xf32>
      %34 = arith.truncf %33 : vector<128x512xf32> to vector<128x512xbf16>
      %c0_12 = arith.constant 0 : index
      %c0_13 = arith.constant 0 : index
      %35 = vector.load %arg6[%c0_12, %c0_13] : memref<128x512xbf16, #tpu.memory_space<vmem>>, vector<128x512xbf16>
      tpu.vector_store %arg6[%c0_12, %c0_13], %34 {strides = array<i32>} : memref<128x512xbf16, #tpu.memory_space<vmem>>, vector<128x512xbf16>,
    } else {
    }
    return
  }
  func.func @transform_0(%arg0: i32, %arg1: i32, %arg2: i32) -> (i32, i32) {
    %c0_i32 = arith.constant 0 : i32
    return %arg0, %arg2 : i32, i32
  }
  func.func @transform_1(%arg0: i32, %arg1: i32, %arg2: i32) -> (i32, i32) {
    %c0_i32 = arith.constant 0 : i32
    return %arg2, %arg1 : i32, i32
  }
  func.func @transform_2(%arg0: i32, %arg1: i32, %arg2: i32) -> (i32, i32) {
    %c0_i32 = arith.constant 0 : i32
    %c0_i32_0 = arith.constant 0 : i32
    return %c0_i32, %arg1 : i32, i32
  }
  func.func @transform_3(%arg0: i32, %arg1: i32, %arg2: i32) -> (i32, i32) {
    %c0_i32 = arith.constant 0 : i32
    return %arg0, %arg1 : i32, i32
  }
}

</mosaic_0001>

<llo_original>
// kernel: tpu_custom_call.1
$region0: #{tpu_custom_call.1}
  #allocation0 [shape = 'u32[]', space=smem, size = 0x4, offset = 0x4, fixed_abs, tag = 'smem constant byte address 0x4 - core index']
  #allocation1 [shape = 'u32[144,128]{1,0:T(1,128)}', space=vmem, size = 0x12000, scoped, tag = 'internal scratch']
  #allocation2 [shape = 'f32[128,512]{1,0:T(8,128)}', space=vmem, size = 0x40000, scoped, tag = 'scratch operand']
  %s0 = inlined_call_operand.vmem [shape: bf16[128,3], index: 0, kind: input, shape index: {}]
  %s1 = inlined_call_operand.vmem [shape: bf16[3,512], index: 1, kind: input, shape index: {}]
  %s2 = inlined_call_operand.vmem [shape: f32[1,512], index: 2, kind: input, shape index: {}]
  %s3 = inlined_call_operand.hbm [shape: bf16[128,512], index: 3, kind: output, shape index: {}]
  %s4 = sld [smem:[#allocation0]]
  $region30: #{tpu_custom_call.1} parent=0
    _
  %s6 = ssub.s32 1, %s4
  %s7 = scalar_select 0, %s6, %s4
  $region1: #{tpu_custom_call.1} parent=0
    #allocation3 [shape = 'u8[131072]{0}', space=vmem, size = 0x20000, scoped, tag = 'output window, operand 0, single buffered']
    #allocation4 [shape = 's32[1]{0}', space=sflag, size = 0x4, scoped, tag = 'scoped memory for tpu_custom_call.1']
    %8 = vsyncpa [#allocation4], 0
    // Predicated region
    $region2: #{tpu_custom_call.1} parent=1 // pred_check
      _
    $region3: #{tpu_custom_call.1} parent=1 // pred_check_branch
      %10 = sbr.rel (0) target = $region5
    $region4: #{tpu_custom_call.1} parent=1 // pred_region
      _
    $region5: #{tpu_custom_call.1} parent=1 // pred_fallthru
      _
    // Predicated region
    $region6: #{tpu_custom_call.1} parent=1 // pred_check
      _
    $region7: #{tpu_custom_call.1} parent=1 // pred_check_branch
      %12 = sbr.rel (0) target = $region9
    $region8: #{tpu_custom_call.1} parent=1 // pred_region
      _
    $region9: #{tpu_custom_call.1} parent=1 // pred_fallthru
      _
    // Predicated region
    $region10: #{tpu_custom_call.1} parent=1 // pred_check
      _
    $region11: #{tpu_custom_call.1} parent=1 // pred_check_branch
      %14 = sbr.rel (0) target = $region13
    $region12: #{tpu_custom_call.1} parent=1 // pred_region
      _
    $region13: #{tpu_custom_call.1} parent=1 // pred_fallthru
      _
    %p15 = scmp.eq.s32.totalorder 0, 0
    // Predicated region
    $region14: #{tpu_custom_call.1} parent=1 // pred_check
      %p16 = pneg %p15
    $region15: #{tpu_custom_call.1} parent=1 // pred_check_branch
      %18 = sbr.rel (%p16) target = $region17
    $region16: #{tpu_custom_call.1} parent=1 // pred_region
      %v19 = vld [vmem:[%s2] sm:$0xf]
      %v21 = vlaneseq
      %v22 = vshrl.u32 %v21, 7
      %v23 = vsub.s32 0, %v22
      %v24 = vrot.slane %v19, %v23
      %v25 = vlaneseq
      %v26 = vshrl.u32 %v25, 7
      %v27 = vsub.s32 1, %v26
      %v28 = vrot.slane %v19, %v27
      %v29 = vlaneseq
      %v30 = vshrl.u32 %v29, 7
      %v31 = vsub.s32 2, %v30
      %v32 = vrot.slane %v19, %v31
      %v33 = vlaneseq
      %v34 = vshrl.u32 %v33, 7
      %v35 = vsub.s32 3, %v34
      %v36 = vrot.slane %v19, %v35
      %41 = vst [vmem:[#allocation2] sm:$0xff] %v24
      %42 = vst [vmem:[#allocation2 + $0x8] sm:$0xff] %v28
      %43 = vst [vmem:[#allocation2 + $0x10] sm:$0xff] %v32
      %44 = vst [vmem:[#allocation2 + $0x18] sm:$0xff] %v36
      %45 = vst [vmem:[#allocation2 + $0x20] sm:$0xff] %v24
      %46 = vst [vmem:[#allocation2 + $0x28] sm:$0xff] %v28
      %47 = vst [vmem:[#allocation2 + $0x30] sm:$0xff] %v32
      %48 = vst [vmem:[#allocation2 + $0x38] sm:$0xff] %v36
      %49 = vst [vmem:[#allocation2 + $0x40] sm:$0xff] %v24
      %50 = vst [vmem:[#allocation2 + $0x48] sm:$0xff] %v28
      %51 = vst [vmem:[#allocation2 + $0x50] sm:$0xff] %v32
      %52 = vst [vmem:[#allocation2 + $0x58] sm:$0xff] %v36
      %53 = vst [vmem:[#allocation2 + $0x60] sm:$0xff] %v24
      %54 = vst [vmem:[#allocation2 + $0x68] sm:$0xff] %v28
      %55 = vst [vmem:[#allocation2 + $0x70] sm:$0xff] %v32
      %56 = vst [vmem:[#allocation2 + $0x78] sm:$0xff] %v36
      %57 = vst [vmem:[#allocation2 + $0x80] sm:$0xff] %v24
      %58 = vst [vmem:[#allocation2 + $0x88] sm:$0xff] %v28
      %59 = vst [vmem:[#allocation2 + $0x90] sm:$0xff] %v32
      %60 = vst [vmem:[#allocation2 + $0x98] sm:$0xff] %v36
      %61 = vst [vmem:[#allocation2 + $0xa0] sm:$0xff] %v24
      %62 = vst [vmem:[#allocation2 + $0xa8] sm:$0xff] %v28
      %63 = vst [vmem:[#allocation2 + $0xb0] sm:$0xff] %v32
      %64 = vst [vmem:[#allocation2 + $0xb8] sm:$0xff] %v36
      %65 = vst [vmem:[#allocation2 + $0xc0] sm:$0xff] %v24
      %66 = vst [vmem:[#allocation2 + $0xc8] sm:$0xff] %v28
      %67 = vst [vmem:[#allocation2 + $0xd0] sm:$0xff] %v32
      %68 = vst [vmem:[#allocation2 + $0xd8] sm:$0xff] %v36
      %69 = vst [vmem:[#allocation2 + $0xe0] sm:$0xff] %v24
      %70 = vst [vmem:[#allocation2 + $0xe8] sm:$0xff] %v28
      %71 = vst [vmem:[#allocation2 + $0xf0] sm:$0xff] %v32
      %72 = vst [vmem:[#allocation2 + $0xf8] sm:$0xff] %v36
      %73 = vst [vmem:[#allocation2 + $0x100] sm:$0xff] %v24
      %74 = vst [vmem:[#allocation2 + $0x108] sm:$0xff] %v28
      %75 = vst [vmem:[#allocation2 + $0x110] sm:$0xff] %v32
      %76 = vst [vmem:[#allocation2 + $0x118] sm:$0xff] %v36
      %77 = vst [vmem:[#allocation2 + $0x120] sm:$0xff] %v24
      %78 = vst [vmem:[#allocation2 + $0x128] sm:$0xff] %v28
      %79 = vst [vmem:[#allocation2 + $0x130] sm:$0xff] %v32
      %80 = vst [vmem:[#allocation2 + $0x138] sm:$0xff] %v36
      %81 = vst [vmem:[#allocation2 + $0x140] sm:$0xff] %v24
      %82 = vst [vmem:[#allocation2 + $0x148] sm:$0xff] %v28
      %83 = vst [vmem:[#allocation2 + $0x150] sm:$0xff] %v32
      %84 = vst [vmem:[#allocation2 + $0x158] sm:$0xff] %v36
      %85 = vst [vmem:[#allocation2 + $0x160] sm:$0xff] %v24
      %86 = vst [vmem:[#allocation2 + $0x168] sm:$0xff] %v28
      %87 = vst [vmem:[#allocation2 + $0x170] sm:$0xff] %v32
      %88 = vst [vmem:[#allocation2 + $0x178] sm:$0xff] %v36
      %89 = vst [vmem:[#allocation2 + $0x180] sm:$0xff] %v24
      %90 = vst [vmem:[#allocation2 + $0x188] sm:$0xff] %v28
      %91 = vst [vmem:[#allocation2 + $0x190] sm:$0xff] %v32
      %92 = vst [vmem:[#allocation2 + $0x198] sm:$0xff] %v36
      %93 = vst [vmem:[#allocation2 + $0x1a0] sm:$0xff] %v24
      %94 = vst [vmem:[#allocation2 + $0x1a8] sm:$0xff] %v28
      %95 = vst [vmem:[#allocation2 + $0x1b0] sm:$0xff] %v32
      %96 = vst [vmem:[#allocation2 + $0x1b8] sm:$0xff] %v36
      %97 = vst [vmem:[#allocation2 + $0x1c0] sm:$0xff] %v24
      %98 = vst [vmem:[#allocation2 + $0x1c8] sm:$0xff] %v28
      %99 = vst [vmem:[#allocation2 + $0x1d0] sm:$0xff] %v32
      %100 = vst [vmem:[#allocation2 + $0x1d8] sm:$0xff] %v36
      %101 = vst [vmem:[#allocation2 + $0x1e0] sm:$0xff] %v24
      %102 = vst [vmem:[#allocation2 + $0x1e8] sm:$0xff] %v28
      %103 = vst [vmem:[#allocation2 + $0x1f0] sm:$0xff] %v32
      %104 = vst [vmem:[#allocation2 + $0x1f8] sm:$0xff] %v36
    $region17: #{tpu_custom_call.1} parent=1 // pred_fallthru
      _
    %v105 = vld [vmem:[%s0] sm:$0xf]
    %v106 = vld [vmem:[%s0 + $0x4] sm:$0xf]
    %v107 = vld [vmem:[%s0 + $0x8] sm:$0xf]
    %v108 = vld [vmem:[%s0 + $0xc] sm:$0xf]
    %v109 = vld [vmem:[%s0 + $0x10] sm:$0xf]
    %v110 = vld [vmem:[%s0 + $0x14] sm:$0xf]
    %v111 = vld [vmem:[%s0 + $0x18] sm:$0xf]
    %v112 = vld [vmem:[%s0 + $0x1c] sm:$0xf]
    %v113 = vld [vmem:[%s0 + $0x20] sm:$0xf]
    %v114 = vld [vmem:[%s0 + $0x24] sm:$0xf]
    %v115 = vld [vmem:[%s0 + $0x28] sm:$0xf]
    %v116 = vld [vmem:[%s0 + $0x2c] sm:$0xf]
    %v117 = vld [vmem:[%s0 + $0x30] sm:$0xf]
    %v118 = vld [vmem:[%s0 + $0x34] sm:$0xf]
    %v119 = vld [vmem:[%s0 + $0x38] sm:$0xf]
    %v120 = vld [vmem:[%s0 + $0x3c] sm:$0xf]
    %v121 = vunpack.c.l.bf16 %v105
    %v122 = vunpack.c.l.bf16 %v106
    %v123 = vunpack.c.l.bf16 %v107
    %v124 = vunpack.c.l.bf16 %v108
    %v125 = vunpack.c.l.bf16 %v109
    %v126 = vunpack.c.l.bf16 %v110
    %v127 = vunpack.c.l.bf16 %v111
    %v128 = vunpack.c.l.bf16 %v112
    %v129 = vunpack.c.l.bf16 %v113
    %v130 = vunpack.c.l.bf16 %v114
    %v131 = vunpack.c.l.bf16 %v115
    %v132 = vunpack.c.l.bf16 %v116
    %v133 = vunpack.c.l.bf16 %v117
    %v134 = vunpack.c.l.bf16 %v118
    %v135 = vunpack.c.l.bf16 %v119
    %v136 = vunpack.c.l.bf16 %v120
    %v137 = vld [vmem:[%s1] sm:$0xff]
    %v138 = vunpack.c.l.bf16 %v137
    %v139 = vunpack.c.h.bf16 %v137
    %v140 = vld [vmem:[#allocation2] sm:$0xff]
    %v141 = vld [vmem:[#allocation2 + $0x8] sm:$0xff]
    %v142 = vld [vmem:[#allocation2 + $0x10] sm:$0xff]
    %v143 = vld [vmem:[#allocation2 + $0x18] sm:$0xff]
    %v144 = vld [vmem:[#allocation2 + $0x20] sm:$0xff]
    %v145 = vld [vmem:[#allocation2 + $0x28] sm:$0xff]
    %v146 = vld [vmem:[#allocation2 + $0x30] sm:$0xff]
    %v147 = vld [vmem:[#allocation2 + $0x38] sm:$0xff]
    %v148 = vld [vmem:[#allocation2 + $0x40] sm:$0xff]
    %v149 = vld [vmem:[#allocation2 + $0x48] sm:$0xff]
    %v150 = vld [vmem:[#allocation2 + $0x50] sm:$0xff]
    %v151 = vld [vmem:[#allocation2 + $0x58] sm:$0xff]
    %v152 = vld [vmem:[#allocation2 + $0x60] sm:$0xff]
    %v153 = vld [vmem:[#allocation2 + $0x68] sm:$0xff]
    %v154 = vld [vmem:[#allocation2 + $0x70] sm:$0xff]
    %v155 = vld [vmem:[#allocation2 + $0x78] sm:$0xff]
    %v156 = vld [vmem:[#allocation2 + $0x80] sm:$0xff]
    %v157 = vld [vmem:[#allocation2 + $0x88] sm:$0xff]
    %v158 = vld [vmem:[#allocation2 + $0x90] sm:$0xff]
    %v159 = vld [vmem:[#allocation2 + $0x98] sm:$0xff]
    %v160 = vld [vmem:[#allocation2 + $0xa0] sm:$0xff]
    %v161 = vld [vmem:[#allocation2 + $0xa8] sm:$0xff]
    %v162 = vld [vmem:[#allocation2 + $0xb0] sm:$0xff]
    %v163 = vld [vmem:[#allocation2 + $0xb8] sm:$0xff]
    %v164 = vld [vmem:[#allocation2 + $0xc0] sm:$0xff]
    %v165 = vld [vmem:[#allocation2 + $0xc8] sm:$0xff]
    %v166 = vld [vmem:[#allocation2 + $0xd0] sm:$0xff]
    %v167 = vld [vmem:[#allocation2 + $0xd8] sm:$0xff]
    %v168 = vld [vmem:[#allocation2 + $0xe0] sm:$0xff]
    %v169 = vld [vmem:[#allocation2 + $0xe8] sm:$0xff]
    %v170 = vld [vmem:[#allocation2 + $0xf0] sm:$0xff]
    %v171 = vld [vmem:[#allocation2 + $0xf8] sm:$0xff]
    %v172 = vld [vmem:[#allocation2 + $0x100] sm:$0xff]
    %v173 = vld [vmem:[#allocation2 + $0x108] sm:$0xff]
    %v174 = vld [vmem:[#allocation2 + $0x110] sm:$0xff]
    %v175 = vld [vmem:[#allocation2 + $0x118] sm:$0xff]
    %v176 = vld [vmem:[#allocation2 + $0x120] sm:$0xff]
    %v177 = vld [vmem:[#allocation2 + $0x128] sm:$0xff]
    %v178 = vld [vmem:[#allocation2 + $0x130] sm:$0xff]
    %v179 = vld [vmem:[#allocation2 + $0x138] sm:$0xff]
    %v180 = vld [vmem:[#allocation2 + $0x140] sm:$0xff]
    %v181 = vld [vmem:[#allocation2 + $0x148] sm:$0xff]
    %v182 = vld [vmem:[#allocation2 + $0x150] sm:$0xff]
    %v183 = vld [vmem:[#allocation2 + $0x158] sm:$0xff]
    %v184 = vld [vmem:[#allocation2 + $0x160] sm:$0xff]
    %v185 = vld [vmem:[#allocation2 + $0x168] sm:$0xff]
    %v186 = vld [vmem:[#allocation2 + $0x170] sm:$0xff]
    %v187 = vld [vmem:[#allocation2 + $0x178] sm:$0xff]
    %v188 = vld [vmem:[#allocation2 + $0x180] sm:$0xff]
    %v189 = vld [vmem:[#allocation2 + $0x188] sm:$0xff]
    %v190 = vld [vmem:[#allocation2 + $0x190] sm:$0xff]
    %v191 = vld [vmem:[#allocation2 + $0x198] sm:$0xff]
    %v192 = vld [vmem:[#allocation2 + $0x1a0] sm:$0xff]
    %v193 = vld [vmem:[#allocation2 + $0x1a8] sm:$0xff]
    %v194 = vld [vmem:[#allocation2 + $0x1b0] sm:$0xff]
    %v195 = vld [vmem:[#allocation2 + $0x1b8] sm:$0xff]
    %v196 = vld [vmem:[#allocation2 + $0x1c0] sm:$0xff]
    %v197 = vld [vmem:[#allocation2 + $0x1c8] sm:$0xff]
    %v198 = vld [vmem:[#allocation2 + $0x1d0] sm:$0xff]
    %v199 = vld [vmem:[#allocation2 + $0x1d8] sm:$0xff]
    %v200 = vld [vmem:[#allocation2 + $0x1e0] sm:$0xff]
    %v201 = vld [vmem:[#allocation2 + $0x1e8] sm:$0xff]
    %v202 = vld [vmem:[#allocation2 + $0x1f0] sm:$0xff]
    %v203 = vld [vmem:[#allocation2 + $0x1f8] sm:$0xff]
    %205 = vset.pattern.permute.xlu0 0
    %206 = vperm.xlu0 %205, %v121
    %v207 = vpop.permute.xlu0 %206
    %210 = vset.pattern.permute.xlu0 0
    %211 = vperm.xlu0 %210, %v122
    %v212 = vpop.permute.xlu0 %211
    %215 = vset.pattern.permute.xlu0 0
    %216 = vperm.xlu0 %215, %v123
    %v217 = vpop.permute.xlu0 %216
    %220 = vset.pattern.permute.xlu0 0
    %221 = vperm.xlu0 %220, %v124
    %v222 = vpop.permute.xlu0 %221
    %225 = vset.pattern.permute.xlu0 0
    %226 = vperm.xlu0 %225, %v125
    %v227 = vpop.permute.xlu0 %226
    %230 = vset.pattern.permute.xlu0 0
    %231 = vperm.xlu0 %230, %v126
    %v232 = vpop.permute.xlu0 %231
    %235 = vset.pattern.permute.xlu0 0
    %236 = vperm.xlu0 %235, %v127
    %v237 = vpop.permute.xlu0 %236
    %240 = vset.pattern.permute.xlu0 0
    %241 = vperm.xlu0 %240, %v128
    %v242 = vpop.permute.xlu0 %241
    %245 = vset.pattern.permute.xlu0 0
    %246 = vperm.xlu0 %245, %v129
    %v247 = vpop.permute.xlu0 %246
    %250 = vset.pattern.permute.xlu0 0
    %251 = vperm.xlu0 %250, %v130
    %v252 = vpop.permute.xlu0 %251
    %255 = vset.pattern.permute.xlu0 0
    %256 = vperm.xlu0 %255, %v131
    %v257 = vpop.permute.xlu0 %256
    %260 = vset.pattern.permute.xlu0 0
    %261 = vperm.xlu0 %260, %v132
    %v262 = vpop.permute.xlu0 %261
    %265 = vset.pattern.permute.xlu0 0
    %266 = vperm.xlu0 %265, %v133
    %v267 = vpop.permute.xlu0 %266
    %270 = vset.pattern.permute.xlu0 0
    %271 = vperm.xlu0 %270, %v134
    %v272 = vpop.permute.xlu0 %271
    %275 = vset.pattern.permute.xlu0 0
    %276 = vperm.xlu0 %275, %v135
    %v277 = vpop.permute.xlu0 %276
    %280 = vset.pattern.permute.xlu0 0
    %281 = vperm.xlu0 %280, %v136
    %v282 = vpop.permute.xlu0 %281
    %v286 = vlaneseq
    %v287 = vshrl.u32 %v286, 7
    %v288 = vsub.s32 0, %v287
    %v289 = vrot.slane %v138, %v288
    %v290 = vlaneseq
    %v291 = vshrl.u32 %v290, 7
    %v292 = vsub.s32 4, %v291
    %v293 = vrot.slane %v138, %v292
    %v294 = vlaneseq
    %v295 = vshrl.u32 %v294, 7
    %v296 = vsub.s32 0, %v295
    %v297 = vrot.slane %v139, %v296
    %v298 = vlaneseq
    %v299 = vshrl.u32 %v298, 7
    %v300 = vsub.s32 4, %v299
    %v301 = vrot.slane %v139, %v300
    %v306 = vlaneseq
    %v307 = vshrl.u32 %v306, 7
    %v308 = vsub.s32 0, %v307
    %v309 = vrot.slane %v289, %v308
    %v310 = vlaneseq
    %v311 = vshrl.u32 %v310, 7
    %v312 = vsub.s32 0, %v311
    %v313 = vrot.slane %v293, %v312
    %v314 = vlaneseq
    %v315 = vshrl.u32 %v314, 7
    %v316 = vsub.s32 0, %v315
    %v317 = vrot.slane %v297, %v316
    %v318 = vlaneseq
    %v319 = vshrl.u32 %v318, 7
    %v320 = vsub.s32 0, %v319
    %v321 = vrot.slane %v301, %v320
    %v322 = vmul.f32 %v207, %v309
    %v323 = vmul.f32 %v207, %v313
    %v324 = vmul.f32 %v207, %v317
    %v325 = vmul.f32 %v207, %v321
    %v326 = vmul.f32 %v212, %v309
    %v327 = vmul.f32 %v212, %v313
    %v328 = vmul.f32 %v212, %v317
    %v329 = vmul.f32 %v212, %v321
    %v330 = vmul.f32 %v217, %v309
    %v331 = vmul.f32 %v217, %v313
    %v332 = vmul.f32 %v217, %v317
    %v333 = vmul.f32 %v217, %v321
    %v334 = vmul.f32 %v222, %v309
    %v335 = vmul.f32 %v222, %v313
    %v336 = vmul.f32 %v222, %v317
    %v337 = vmul.f32 %v222, %v321
    %v338 = vmul.f32 %v227, %v309
    %v339 = vmul.f32 %v227, %v313
    %v340 = vmul.f32 %v227, %v317
    %v341 = vmul.f32 %v227, %v321
    %v342 = vmul.f32 %v232, %v309
    %v343 = vmul.f32 %v232, %v313
    %v344 = vmul.f32 %v232, %v317
    %v345 = vmul.f32 %v232, %v321
    %v346 = vmul.f32 %v237, %v309
    %v347 = vmul.f32 %v237, %v313
    %v348 = vmul.f32 %v237, %v317
    %v349 = vmul.f32 %v237, %v321
    %v350 = vmul.f32 %v242, %v309
    %v351 = vmul.f32 %v242, %v313
    %v352 = vmul.f32 %v242, %v317
    %v353 = vmul.f32 %v242, %v321
    %v354 = vmul.f32 %v247, %v309
    %v355 = vmul.f32 %v247, %v313
    %v356 = vmul.f32 %v247, %v317
    %v357 = vmul.f32 %v247, %v321
    %v358 = vmul.f32 %v252, %v309
    %v359 = vmul.f32 %v252, %v313
    %v360 = vmul.f32 %v252, %v317
    %v361 = vmul.f32 %v252, %v321
    %v362 = vmul.f32 %v257, %v309
    %v363 = vmul.f32 %v257, %v313
    %v364 = vmul.f32 %v257, %v317
    %v365 = vmul.f32 %v257, %v321
    %v366 = vmul.f32 %v262, %v309
    %v367 = vmul.f32 %v262, %v313
    %v368 = vmul.f32 %v262, %v317
    %v369 = vmul.f32 %v262, %v321
    %v370 = vmul.f32 %v267, %v309
    %v371 = vmul.f32 %v267, %v313
    %v372 = vmul.f32 %v267, %v317
    %v373 = vmul.f32 %v267, %v321
    %v374 = vmul.f32 %v272, %v309
    %v375 = vmul.f32 %v272, %v313
    %v376 = vmul.f32 %v272, %v317
    %v377 = vmul.f32 %v272, %v321
    %v378 = vmul.f32 %v277, %v309
    %v379 = vmul.f32 %v277, %v313
    %v380 = vmul.f32 %v277, %v317
    %v381 = vmul.f32 %v277, %v321
    %v382 = vmul.f32 %v282, %v309
    %v383 = vmul.f32 %v282, %v313
    %v384 = vmul.f32 %v282, %v317
    %v385 = vmul.f32 %v282, %v321
    %v386 = vadd.f32 %v140, %v322
    %v387 = vadd.f32 %v141, %v323
    %v388 = vadd.f32 %v142, %v324
    %v389 = vadd.f32 %v143, %v325
    %v390 = vadd.f32 %v144, %v326
    %v391 = vadd.f32 %v145, %v327
    %v392 = vadd.f32 %v146, %v328
    %v393 = vadd.f32 %v147, %v329
    %v394 = vadd.f32 %v148, %v330
    %v395 = vadd.f32 %v149, %v331
    %v396 = vadd.f32 %v150, %v332
    %v397 = vadd.f32 %v151, %v333
    %v398 = vadd.f32 %v152, %v334
    %v399 = vadd.f32 %v153, %v335
    %v400 = vadd.f32 %v154, %v336
    %v401 = vadd.f32 %v155, %v337
    %v402 = vadd.f32 %v156, %v338
    %v403 = vadd.f32 %v157, %v339
    %v404 = vadd.f32 %v158, %v340
    %v405 = vadd.f32 %v159, %v341
    %v406 = vadd.f32 %v160, %v342
    %v407 = vadd.f32 %v161, %v343
    %v408 = vadd.f32 %v162, %v344
    %v409 = vadd.f32 %v163, %v345
    %v410 = vadd.f32 %v164, %v346
    %v411 = vadd.f32 %v165, %v347
    %v412 = vadd.f32 %v166, %v348
    %v413 = vadd.f32 %v167, %v349
    %v414 = vadd.f32 %v168, %v350
    %v415 = vadd.f32 %v169, %v351
    %v416 = vadd.f32 %v170, %v352
    %v417 = vadd.f32 %v171, %v353
    %v418 = vadd.f32 %v172, %v354
    %v419 = vadd.f32 %v173, %v355
    %v420 = vadd.f32 %v174, %v356
    %v421 = vadd.f32 %v175, %v357
    %v422 = vadd.f32 %v176, %v358
    %v423 = vadd.f32 %v177, %v359
    %v424 = vadd.f32 %v178, %v360
    %v425 = vadd.f32 %v179, %v361
    %v426 = vadd.f32 %v180, %v362
    %v427 = vadd.f32 %v181, %v363
    %v428 = vadd.f32 %v182, %v364
    %v429 = vadd.f32 %v183, %v365
    %v430 = vadd.f32 %v184, %v366
    %v431 = vadd.f32 %v185, %v367
    %v432 = vadd.f32 %v186, %v368
    %v433 = vadd.f32 %v187, %v369
    %v434 = vadd.f32 %v188, %v370
    %v435 = vadd.f32 %v189, %v371
    %v436 = vadd.f32 %v190, %v372
    %v437 = vadd.f32 %v191, %v373
    %v438 = vadd.f32 %v192, %v374
    %v439 = vadd.f32 %v193, %v375
    %v440 = vadd.f32 %v194, %v376
    %v441 = vadd.f32 %v195, %v377
    %v442 = vadd.f32 %v196, %v378
    %v443 = vadd.f32 %v197, %v379
    %v444 = vadd.f32 %v198, %v380
    %v445 = vadd.f32 %v199, %v381
    %v446 = vadd.f32 %v200, %v382
    %v447 = vadd.f32 %v201, %v383
    %v448 = vadd.f32 %v202, %v384
    %v449 = vadd.f32 %v203, %v385
    %450 = vset.pattern.permute.xlu0 1
    %451 = vperm.xlu0 %450, %v121
    %v452 = vpop.permute.xlu0 %451
    %454 = vset.pattern.permute.xlu0 1
    %455 = vperm.xlu0 %454, %v122
    %v456 = vpop.permute.xlu0 %455
    %458 = vset.pattern.permute.xlu0 1
    %459 = vperm.xlu0 %458, %v123
    %v460 = vpop.permute.xlu0 %459
    %462 = vset.pattern.permute.xlu0 1
    %463 = vperm.xlu0 %462, %v124
    %v464 = vpop.permute.xlu0 %463
    %466 = vset.pattern.permute.xlu0 1
    %467 = vperm.xlu0 %466, %v125
    %v468 = vpop.permute.xlu0 %467
    %470 = vset.pattern.permute.xlu0 1
    %471 = vperm.xlu0 %470, %v126
    %v472 = vpop.permute.xlu0 %471
    %474 = vset.pattern.permute.xlu0 1
    %475 = vperm.xlu0 %474, %v127
    %v476 = vpop.permute.xlu0 %475
    %478 = vset.pattern.permute.xlu0 1
    %479 = vperm.xlu0 %478, %v128
    %v480 = vpop.permute.xlu0 %479
    %482 = vset.pattern.permute.xlu0 1
    %483 = vperm.xlu0 %482, %v129
    %v484 = vpop.permute.xlu0 %483
    %486 = vset.pattern.permute.xlu0 1
    %487 = vperm.xlu0 %486, %v130
    %v488 = vpop.permute.xlu0 %487
    %490 = vset.pattern.permute.xlu0 1
    %491 = vperm.xlu0 %490, %v131
    %v492 = vpop.permute.xlu0 %491
    %494 = vset.pattern.permute.xlu0 1
    %495 = vperm.xlu0 %494, %v132
    %v496 = vpop.permute.xlu0 %495
    %498 = vset.pattern.permute.xlu0 1
    %499 = vperm.xlu0 %498, %v133
    %v500 = vpop.permute.xlu0 %499
    %502 = vset.pattern.permute.xlu0 1
    %503 = vperm.xlu0 %502, %v134
    %v504 = vpop.permute.xlu0 %503
    %506 = vset.pattern.permute.xlu0 1
    %507 = vperm.xlu0 %506, %v135
    %v508 = vpop.permute.xlu0 %507
    %510 = vset.pattern.permute.xlu0 1
    %511 = vperm.xlu0 %510, %v136
    %v512 = vpop.permute.xlu0 %511
    %v514 = vlaneseq
    %v515 = vshrl.u32 %v514, 7
    %v516 = vsub.s32 1, %v515
    %v517 = vrot.slane %v138, %v516
    %v518 = vlaneseq
    %v519 = vshrl.u32 %v518, 7
    %v520 = vsub.s32 5, %v519
    %v521 = vrot.slane %v138, %v520
    %v522 = vlaneseq
    %v523 = vshrl.u32 %v522, 7
    %v524 = vsub.s32 1, %v523
    %v525 = vrot.slane %v139, %v524
    %v526 = vlaneseq
    %v527 = vshrl.u32 %v526, 7
    %v528 = vsub.s32 5, %v527
    %v529 = vrot.slane %v139, %v528
    %v534 = vlaneseq
    %v535 = vshrl.u32 %v534, 7
    %v536 = vsub.s32 1, %v535
    %v537 = vrot.slane %v517, %v536
    %v538 = vlaneseq
    %v539 = vshrl.u32 %v538, 7
    %v540 = vsub.s32 1, %v539
    %v541 = vrot.slane %v521, %v540
    %v542 = vlaneseq
    %v543 = vshrl.u32 %v542, 7
    %v544 = vsub.s32 1, %v543
    %v545 = vrot.slane %v525, %v544
    %v546 = vlaneseq
    %v547 = vshrl.u32 %v546, 7
    %v548 = vsub.s32 1, %v547
    %v549 = vrot.slane %v529, %v548
    %v550 = vmul.f32 %v452, %v537
    %v551 = vmul.f32 %v452, %v541
    %v552 = vmul.f32 %v452, %v545
    %v553 = vmul.f32 %v452, %v549
    %v554 = vmul.f32 %v456, %v537
    %v555 = vmul.f32 %v456, %v541
    %v556 = vmul.f32 %v456, %v545
    %v557 = vmul.f32 %v456, %v549
    %v558 = vmul.f32 %v460, %v537
    %v559 = vmul.f32 %v460, %v541
    %v560 = vmul.f32 %v460, %v545
    %v561 = vmul.f32 %v460, %v549
    %v562 = vmul.f32 %v464, %v537
    %v563 = vmul.f32 %v464, %v541
    %v564 = vmul.f32 %v464, %v545
    %v565 = vmul.f32 %v464, %v549
    %v566 = vmul.f32 %v468, %v537
    %v567 = vmul.f32 %v468, %v541
    %v568 = vmul.f32 %v468, %v545
    %v569 = vmul.f32 %v468, %v549
    %v570 = vmul.f32 %v472, %v537
    %v571 = vmul.f32 %v472, %v541
    %v572 = vmul.f32 %v472, %v545
    %v573 = vmul.f32 %v472, %v549
    %v574 = vmul.f32 %v476, %v537
    %v575 = vmul.f32 %v476, %v541
    %v576 = vmul.f32 %v476, %v545
    %v577 = vmul.f32 %v476, %v549
    %v578 = vmul.f32 %v480, %v537
    %v579 = vmul.f32 %v480, %v541
    %v580 = vmul.f32 %v480, %v545
    %v581 = vmul.f32 %v480, %v549
    %v582 = vmul.f32 %v484, %v537
    %v583 = vmul.f32 %v484, %v541
    %v584 = vmul.f32 %v484, %v545
    %v585 = vmul.f32 %v484, %v549
    %v586 = vmul.f32 %v488, %v537
    %v587 = vmul.f32 %v488, %v541
    %v588 = vmul.f32 %v488, %v545
    %v589 = vmul.f32 %v488, %v549
    %v590 = vmul.f32 %v492, %v537
    %v591 = vmul.f32 %v492, %v541
    %v592 = vmul.f32 %v492, %v545
    %v593 = vmul.f32 %v492, %v549
    %v594 = vmul.f32 %v496, %v537
    %v595 = vmul.f32 %v496, %v541
    %v596 = vmul.f32 %v496, %v545
    %v597 = vmul.f32 %v496, %v549
    %v598 = vmul.f32 %v500, %v537
    %v599 = vmul.f32 %v500, %v541
    %v600 = vmul.f32 %v500, %v545
    %v601 = vmul.f32 %v500, %v549
    %v602 = vmul.f32 %v504, %v537
    %v603 = vmul.f32 %v504, %v541
    %v604 = vmul.f32 %v504, %v545
    %v605 = vmul.f32 %v504, %v549
    %v606 = vmul.f32 %v508, %v537
    %v607 = vmul.f32 %v508, %v541
    %v608 = vmul.f32 %v508, %v545
    %v609 = vmul.f32 %v508, %v549
    %v610 = vmul.f32 %v512, %v537
    %v611 = vmul.f32 %v512, %v541
    %v612 = vmul.f32 %v512, %v545
    %v613 = vmul.f32 %v512, %v549
    %v614 = vadd.f32 %v386, %v550
    %v615 = vadd.f32 %v387, %v551
    %v616 = vadd.f32 %v388, %v552
    %v617 = vadd.f32 %v389, %v553
    %v618 = vadd.f32 %v390, %v554
    %v619 = vadd.f32 %v391, %v555
    %v620 = vadd.f32 %v392, %v556
    %v621 = vadd.f32 %v393, %v557
    %v622 = vadd.f32 %v394, %v558
    %v623 = vadd.f32 %v395, %v559
    %v624 = vadd.f32 %v396, %v560
    %v625 = vadd.f32 %v397, %v561
    %v626 = vadd.f32 %v398, %v562
    %v627 = vadd.f32 %v399, %v563
    %v628 = vadd.f32 %v400, %v564
    %v629 = vadd.f32 %v401, %v565
    %v630 = vadd.f32 %v402, %v566
    %v631 = vadd.f32 %v403, %v567
    %v632 = vadd.f32 %v404, %v568
    %v633 = vadd.f32 %v405, %v569
    %v634 = vadd.f32 %v406, %v570
    %v635 = vadd.f32 %v407, %v571
    %v636 = vadd.f32 %v408, %v572
    %v637 = vadd.f32 %v409, %v573
    %v638 = vadd.f32 %v410, %v574
    %v639 = vadd.f32 %v411, %v575
    %v640 = vadd.f32 %v412, %v576
    %v641 = vadd.f32 %v413, %v577
    %v642 = vadd.f32 %v414, %v578
    %v643 = vadd.f32 %v415, %v579
    %v644 = vadd.f32 %v416, %v580
    %v645 = vadd.f32 %v417, %v581
    %v646 = vadd.f32 %v418, %v582
    %v647 = vadd.f32 %v419, %v583
    %v648 = vadd.f32 %v420, %v584
    %v649 = vadd.f32 %v421, %v585
    %v650 = vadd.f32 %v422, %v586
    %v651 = vadd.f32 %v423, %v587
    %v652 = vadd.f32 %v424, %v588
    %v653 = vadd.f32 %v425, %v589
    %v654 = vadd.f32 %v426, %v590
    %v655 = vadd.f32 %v427, %v591
    %v656 = vadd.f32 %v428, %v592
    %v657 = vadd.f32 %v429, %v593
    %v658 = vadd.f32 %v430, %v594
    %v659 = vadd.f32 %v431, %v595
    %v660 = vadd.f32 %v432, %v596
    %v661 = vadd.f32 %v433, %v597
    %v662 = vadd.f32 %v434, %v598
    %v663 = vadd.f32 %v435, %v599
    %v664 = vadd.f32 %v436, %v600
    %v665 = vadd.f32 %v437, %v601
    %v666 = vadd.f32 %v438, %v602
    %v667 = vadd.f32 %v439, %v603
    %v668 = vadd.f32 %v440, %v604
    %v669 = vadd.f32 %v441, %v605
    %v670 = vadd.f32 %v442, %v606
    %v671 = vadd.f32 %v443, %v607
    %v672 = vadd.f32 %v444, %v608
    %v673 = vadd.f32 %v445, %v609
    %v674 = vadd.f32 %v446, %v610
    %v675 = vadd.f32 %v447, %v611
    %v676 = vadd.f32 %v448, %v612
    %v677 = vadd.f32 %v449, %v613
    %678 = vset.pattern.permute.xlu0 2
    %679 = vperm.xlu0 %678, %v121
    %v680 = vpop.permute.xlu0 %679
    %682 = vset.pattern.permute.xlu0 2
    %683 = vperm.xlu0 %682, %v122
    %v684 = vpop.permute.xlu0 %683
    %686 = vset.pattern.permute.xlu0 2
    %687 = vperm.xlu0 %686, %v123
    %v688 = vpop.permute.xlu0 %687
    %690 = vset.pattern.permute.xlu0 2
    %691 = vperm.xlu0 %690, %v124
    %v692 = vpop.permute.xlu0 %691
    %694 = vset.pattern.permute.xlu0 2
    %695 = vperm.xlu0 %694, %v125
    %v696 = vpop.permute.xlu0 %695
    %698 = vset.pattern.permute.xlu0 2
    %699 = vperm.xlu0 %698, %v126
    %v700 = vpop.permute.xlu0 %699
    %702 = vset.pattern.permute.xlu0 2
    %703 = vperm.xlu0 %702, %v127
    %v704 = vpop.permute.xlu0 %703
    %706 = vset.pattern.permute.xlu0 2
    %707 = vperm.xlu0 %706, %v128
    %v708 = vpop.permute.xlu0 %707
    %710 = vset.pattern.permute.xlu0 2
    %711 = vperm.xlu0 %710, %v129
    %v712 = vpop.permute.xlu0 %711
    %714 = vset.pattern.permute.xlu0 2
    %715 = vperm.xlu0 %714, %v130
    %v716 = vpop.permute.xlu0 %715
    %718 = vset.pattern.permute.xlu0 2
    %719 = vperm.xlu0 %718, %v131
    %v720 = vpop.permute.xlu0 %719
    %722 = vset.pattern.permute.xlu0 2
    %723 = vperm.xlu0 %722, %v132
    %v724 = vpop.permute.xlu0 %723
    %726 = vset.pattern.permute.xlu0 2
    %727 = vperm.xlu0 %726, %v133
    %v728 = vpop.permute.xlu0 %727
    %730 = vset.pattern.permute.xlu0 2
    %731 = vperm.xlu0 %730, %v134
    %v732 = vpop.permute.xlu0 %731
    %734 = vset.pattern.permute.xlu0 2
    %735 = vperm.xlu0 %734, %v135
    %v736 = vpop.permute.xlu0 %735
    %738 = vset.pattern.permute.xlu0 2
    %739 = vperm.xlu0 %738, %v136
    %v740 = vpop.permute.xlu0 %739
    %v742 = vlaneseq
    %v743 = vshrl.u32 %v742, 7
    %v744 = vsub.s32 2, %v743
    %v745 = vrot.slane %v138, %v744
    %v746 = vlaneseq
    %v747 = vshrl.u32 %v746, 7
    %v748 = vsub.s32 6, %v747
    %v749 = vrot.slane %v138, %v748
    %v750 = vlaneseq
    %v751 = vshrl.u32 %v750, 7
    %v752 = vsub.s32 2, %v751
    %v753 = vrot.slane %v139, %v752
    %v754 = vlaneseq
    %v755 = vshrl.u32 %v754, 7
    %v756 = vsub.s32 6, %v755
    %v757 = vrot.slane %v139, %v756
    %v762 = vlaneseq
    %v763 = vshrl.u32 %v762, 7
    %v764 = vsub.s32 2, %v763
    %v765 = vrot.slane %v745, %v764
    %v766 = vlaneseq
    %v767 = vshrl.u32 %v766, 7
    %v768 = vsub.s32 2, %v767
    %v769 = vrot.slane %v749, %v768
    %v770 = vlaneseq
    %v771 = vshrl.u32 %v770, 7
    %v772 = vsub.s32 2, %v771
    %v773 = vrot.slane %v753, %v772
    %v774 = vlaneseq
    %v775 = vshrl.u32 %v774, 7
    %v776 = vsub.s32 2, %v775
    %v777 = vrot.slane %v757, %v776
    %v778 = vmul.f32 %v680, %v765
    %v779 = vmul.f32 %v680, %v769
    %v780 = vmul.f32 %v680, %v773
    %v781 = vmul.f32 %v680, %v777
    %v782 = vmul.f32 %v684, %v765
    %v783 = vmul.f32 %v684, %v769
    %v784 = vmul.f32 %v684, %v773
    %v785 = vmul.f32 %v684, %v777
    %v786 = vmul.f32 %v688, %v765
    %v787 = vmul.f32 %v688, %v769
    %v788 = vmul.f32 %v688, %v773
    %v789 = vmul.f32 %v688, %v777
    %v790 = vmul.f32 %v692, %v765
    %v791 = vmul.f32 %v692, %v769
    %v792 = vmul.f32 %v692, %v773
    %v793 = vmul.f32 %v692, %v777
    %v794 = vmul.f32 %v696, %v765
    %v795 = vmul.f32 %v696, %v769
    %v796 = vmul.f32 %v696, %v773
    %v797 = vmul.f32 %v696, %v777
    %v798 = vmul.f32 %v700, %v765
    %v799 = vmul.f32 %v700, %v769
    %v800 = vmul.f32 %v700, %v773
    %v801 = vmul.f32 %v700, %v777
    %v802 = vmul.f32 %v704, %v765
    %v803 = vmul.f32 %v704, %v769
    %v804 = vmul.f32 %v704, %v773
    %v805 = vmul.f32 %v704, %v777
    %v806 = vmul.f32 %v708, %v765
    %v807 = vmul.f32 %v708, %v769
    %v808 = vmul.f32 %v708, %v773
    %v809 = vmul.f32 %v708, %v777
    %v810 = vmul.f32 %v712, %v765
    %v811 = vmul.f32 %v712, %v769
    %v812 = vmul.f32 %v712, %v773
    %v813 = vmul.f32 %v712, %v777
    %v814 = vmul.f32 %v716, %v765
    %v815 = vmul.f32 %v716, %v769
    %v816 = vmul.f32 %v716, %v773
    %v817 = vmul.f32 %v716, %v777
    %v818 = vmul.f32 %v720, %v765
    %v819 = vmul.f32 %v720, %v769
    %v820 = vmul.f32 %v720, %v773
    %v821 = vmul.f32 %v720, %v777
    %v822 = vmul.f32 %v724, %v765
    %v823 = vmul.f32 %v724, %v769
    %v824 = vmul.f32 %v724, %v773
    %v825 = vmul.f32 %v724, %v777
    %v826 = vmul.f32 %v728, %v765
    %v827 = vmul.f32 %v728, %v769
    %v828 = vmul.f32 %v728, %v773
    %v829 = vmul.f32 %v728, %v777
    %v830 = vmul.f32 %v732, %v765
    %v831 = vmul.f32 %v732, %v769
    %v832 = vmul.f32 %v732, %v773
    %v833 = vmul.f32 %v732, %v777
    %v834 = vmul.f32 %v736, %v765
    %v835 = vmul.f32 %v736, %v769
    %v836 = vmul.f32 %v736, %v773
    %v837 = vmul.f32 %v736, %v777
    %v838 = vmul.f32 %v740, %v765
    %v839 = vmul.f32 %v740, %v769
    %v840 = vmul.f32 %v740, %v773
    %v841 = vmul.f32 %v740, %v777
    %v842 = vadd.f32 %v614, %v778
    %v843 = vadd.f32 %v615, %v779
    %v844 = vadd.f32 %v616, %v780
    %v845 = vadd.f32 %v617, %v781
    %v846 = vadd.f32 %v618, %v782
    %v847 = vadd.f32 %v619, %v783
    %v848 = vadd.f32 %v620, %v784
    %v849 = vadd.f32 %v621, %v785
    %v850 = vadd.f32 %v622, %v786
    %v851 = vadd.f32 %v623, %v787
    %v852 = vadd.f32 %v624, %v788
    %v853 = vadd.f32 %v625, %v789
    %v854 = vadd.f32 %v626, %v790
    %v855 = vadd.f32 %v627, %v791
    %v856 = vadd.f32 %v628, %v792
    %v857 = vadd.f32 %v629, %v793
    %v858 = vadd.f32 %v630, %v794
    %v859 = vadd.f32 %v631, %v795
    %v860 = vadd.f32 %v632, %v796
    %v861 = vadd.f32 %v633, %v797
    %v862 = vadd.f32 %v634, %v798
    %v863 = vadd.f32 %v635, %v799
    %v864 = vadd.f32 %v636, %v800
    %v865 = vadd.f32 %v637, %v801
    %v866 = vadd.f32 %v638, %v802
    %v867 = vadd.f32 %v639, %v803
    %v868 = vadd.f32 %v640, %v804
    %v869 = vadd.f32 %v641, %v805
    %v870 = vadd.f32 %v642, %v806
    %v871 = vadd.f32 %v643, %v807
    %v872 = vadd.f32 %v644, %v808
    %v873 = vadd.f32 %v645, %v809
    %v874 = vadd.f32 %v646, %v810
    %v875 = vadd.f32 %v647, %v811
    %v876 = vadd.f32 %v648, %v812
    %v877 = vadd.f32 %v649, %v813
    %v878 = vadd.f32 %v650, %v814
    %v879 = vadd.f32 %v651, %v815
    %v880 = vadd.f32 %v652, %v816
    %v881 = vadd.f32 %v653, %v817
    %v882 = vadd.f32 %v654, %v818
    %v883 = vadd.f32 %v655, %v819
    %v884 = vadd.f32 %v656, %v820
    %v885 = vadd.f32 %v657, %v821
    %v886 = vadd.f32 %v658, %v822
    %v887 = vadd.f32 %v659, %v823
    %v888 = vadd.f32 %v660, %v824
    %v889 = vadd.f32 %v661, %v825
    %v890 = vadd.f32 %v662, %v826
    %v891 = vadd.f32 %v663, %v827
    %v892 = vadd.f32 %v664, %v828
    %v893 = vadd.f32 %v665, %v829
    %v894 = vadd.f32 %v666, %v830
    %v895 = vadd.f32 %v667, %v831
    %v896 = vadd.f32 %v668, %v832
    %v897 = vadd.f32 %v669, %v833
    %v898 = vadd.f32 %v670, %v834
    %v899 = vadd.f32 %v671, %v835
    %v900 = vadd.f32 %v672, %v836
    %v901 = vadd.f32 %v673, %v837
    %v902 = vadd.f32 %v674, %v838
    %v903 = vadd.f32 %v675, %v839
    %v904 = vadd.f32 %v676, %v840
    %v905 = vadd.f32 %v677, %v841
    %906 = vst [vmem:[#allocation2] sm:$0xff] %v842
    %907 = vst [vmem:[#allocation2 + $0x8] sm:$0xff] %v843
    %908 = vst [vmem:[#allocation2 + $0x10] sm:$0xff] %v844
    %909 = vst [vmem:[#allocation2 + $0x18] sm:$0xff] %v845
    %910 = vst [vmem:[#allocation2 + $0x20] sm:$0xff] %v846
    %911 = vst [vmem:[#allocation2 + $0x28] sm:$0xff] %v847
    %912 = vst [vmem:[#allocation2 + $0x30] sm:$0xff] %v848
    %913 = vst [vmem:[#allocation2 + $0x38] sm:$0xff] %v849
    %914 = vst [vmem:[#allocation2 + $0x40] sm:$0xff] %v850
    %915 = vst [vmem:[#allocation2 + $0x48] sm:$0xff] %v851
    %916 = vst [vmem:[#allocation2 + $0x50] sm:$0xff] %v852
    %917 = vst [vmem:[#allocation2 + $0x58] sm:$0xff] %v853
    %918 = vst [vmem:[#allocation2 + $0x60] sm:$0xff] %v854
    %919 = vst [vmem:[#allocation2 + $0x68] sm:$0xff] %v855
    %920 = vst [vmem:[#allocation2 + $0x70] sm:$0xff] %v856
    %921 = vst [vmem:[#allocation2 + $0x78] sm:$0xff] %v857
    %922 = vst [vmem:[#allocation2 + $0x80] sm:$0xff] %v858
    %923 = vst [vmem:[#allocation2 + $0x88] sm:$0xff] %v859
    %924 = vst [vmem:[#allocation2 + $0x90] sm:$0xff] %v860
    %925 = vst [vmem:[#allocation2 + $0x98] sm:$0xff] %v861
    %926 = vst [vmem:[#allocation2 + $0xa0] sm:$0xff] %v862
    %927 = vst [vmem:[#allocation2 + $0xa8] sm:$0xff] %v863
    %928 = vst [vmem:[#allocation2 + $0xb0] sm:$0xff] %v864
    %929 = vst [vmem:[#allocation2 + $0xb8] sm:$0xff] %v865
    %930 = vst [vmem:[#allocation2 + $0xc0] sm:$0xff] %v866
    %931 = vst [vmem:[#allocation2 + $0xc8] sm:$0xff] %v867
    %932 = vst [vmem:[#allocation2 + $0xd0] sm:$0xff] %v868
    %933 = vst [vmem:[#allocation2 + $0xd8] sm:$0xff] %v869
    %934 = vst [vmem:[#allocation2 + $0xe0] sm:$0xff] %v870
    %935 = vst [vmem:[#allocation2 + $0xe8] sm:$0xff] %v871
    %936 = vst [vmem:[#allocation2 + $0xf0] sm:$0xff] %v872
    %937 = vst [vmem:[#allocation2 + $0xf8] sm:$0xff] %v873
    %938 = vst [vmem:[#allocation2 + $0x100] sm:$0xff] %v874
    %939 = vst [vmem:[#allocation2 + $0x108] sm:$0xff] %v875
    %940 = vst [vmem:[#allocation2 + $0x110] sm:$0xff] %v876
    %941 = vst [vmem:[#allocation2 + $0x118] sm:$0xff] %v877
    %942 = vst [vmem:[#allocation2 + $0x120] sm:$0xff] %v878
    %943 = vst [vmem:[#allocation2 + $0x128] sm:$0xff] %v879
    %944 = vst [vmem:[#allocation2 + $0x130] sm:$0xff] %v880
    %945 = vst [vmem:[#allocation2 + $0x138] sm:$0xff] %v881
    %946 = vst [vmem:[#allocation2 + $0x140] sm:$0xff] %v882
    %947 = vst [vmem:[#allocation2 + $0x148] sm:$0xff] %v883
    %948 = vst [vmem:[#allocation2 + $0x150] sm:$0xff] %v884
    %949 = vst [vmem:[#allocation2 + $0x158] sm:$0xff] %v885
    %950 = vst [vmem:[#allocation2 + $0x160] sm:$0xff] %v886
    %951 = vst [vmem:[#allocation2 + $0x168] sm:$0xff] %v887
    %952 = vst [vmem:[#allocation2 + $0x170] sm:$0xff] %v888
    %953 = vst [vmem:[#allocation2 + $0x178] sm:$0xff] %v889
    %954 = vst [vmem:[#allocation2 + $0x180] sm:$0xff] %v890
    %955 = vst [vmem:[#allocation2 + $0x188] sm:$0xff] %v891
    %956 = vst [vmem:[#allocation2 + $0x190] sm:$0xff] %v892
    %957 = vst [vmem:[#allocation2 + $0x198] sm:$0xff] %v893
    %958 = vst [vmem:[#allocation2 + $0x1a0] sm:$0xff] %v894
    %959 = vst [vmem:[#allocation2 + $0x1a8] sm:$0xff] %v895
    %960 = vst [vmem:[#allocation2 + $0x1b0] sm:$0xff] %v896
    %961 = vst [vmem:[#allocation2 + $0x1b8] sm:$0xff] %v897
    %962 = vst [vmem:[#allocation2 + $0x1c0] sm:$0xff] %v898
    %963 = vst [vmem:[#allocation2 + $0x1c8] sm:$0xff] %v899
    %964 = vst [vmem:[#allocation2 + $0x1d0] sm:$0xff] %v900
    %965 = vst [vmem:[#allocation2 + $0x1d8] sm:$0xff] %v901
    %966 = vst [vmem:[#allocation2 + $0x1e0] sm:$0xff] %v902
    %967 = vst [vmem:[#allocation2 + $0x1e8] sm:$0xff] %v903
    %968 = vst [vmem:[#allocation2 + $0x1f0] sm:$0xff] %v904
    %969 = vst [vmem:[#allocation2 + $0x1f8] sm:$0xff] %v905
    // Predicated region
    $region18: #{tpu_custom_call.1} parent=1 // pred_check
      %p970 = pneg %p15
    $region19: #{tpu_custom_call.1} parent=1 // pred_check_branch
      %972 = sbr.rel (%p970) target = $region21
    $region20: #{tpu_custom_call.1} parent=1 // pred_region
      %v973 = vld [vmem:[#allocation2] sm:$0xff]
      %v974 = vld [vmem:[#allocation2 + $0x8] sm:$0xff]
      %v975 = vld [vmem:[#allocation2 + $0x10] sm:$0xff]
      %v976 = vld [vmem:[#allocation2 + $0x18] sm:$0xff]
      %v977 = vld [vmem:[#allocation2 + $0x20] sm:$0xff]
      %v978 = vld [vmem:[#allocation2 + $0x28] sm:$0xff]
      %v979 = vld [vmem:[#allocation2 + $0x30] sm:$0xff]
      %v980 = vld [vmem:[#allocation2 + $0x38] sm:$0xff]
      %v981 = vld [vmem:[#allocation2 + $0x40] sm:$0xff]
      %v982 = vld [vmem:[#allocation2 + $0x48] sm:$0xff]
      %v983 = vld [vmem:[#allocation2 + $0x50] sm:$0xff]
      %v984 = vld [vmem:[#allocation2 + $0x58] sm:$0xff]
      %v985 = vld [vmem:[#allocation2 + $0x60] sm:$0xff]
      %v986 = vld [vmem:[#allocation2 + $0x68] sm:$0xff]
      %v987 = vld [vmem:[#allocation2 + $0x70] sm:$0xff]
      %v988 = vld [vmem:[#allocation2 + $0x78] sm:$0xff]
      %v989 = vld [vmem:[#allocation2 + $0x80] sm:$0xff]
      %v990 = vld [vmem:[#allocation2 + $0x88] sm:$0xff]
      %v991 = vld [vmem:[#allocation2 + $0x90] sm:$0xff]
      %v992 = vld [vmem:[#allocation2 + $0x98] sm:$0xff]
      %v993 = vld [vmem:[#allocation2 + $0xa0] sm:$0xff]
      %v994 = vld [vmem:[#allocation2 + $0xa8] sm:$0xff]
      %v995 = vld [vmem:[#allocation2 + $0xb0] sm:$0xff]
      %v996 = vld [vmem:[#allocation2 + $0xb8] sm:$0xff]
      %v997 = vld [vmem:[#allocation2 + $0xc0] sm:$0xff]
      %v998 = vld [vmem:[#allocation2 + $0xc8] sm:$0xff]
      %v999 = vld [vmem:[#allocation2 + $0xd0] sm:$0xff]
      %v1000 = vld [vmem:[#allocation2 + $0xd8] sm:$0xff]
      %v1001 = vld [vmem:[#allocation2 + $0xe0] sm:$0xff]
      %v1002 = vld [vmem:[#allocation2 + $0xe8] sm:$0xff]
      %v1003 = vld [vmem:[#allocation2 + $0xf0] sm:$0xff]
      %v1004 = vld [vmem:[#allocation2 + $0xf8] sm:$0xff]
      %v1005 = vld [vmem:[#allocation2 + $0x100] sm:$0xff]
      %v1006 = vld [vmem:[#allocation2 + $0x108] sm:$0xff]
      %v1007 = vld [vmem:[#allocation2 + $0x110] sm:$0xff]
      %v1008 = vld [vmem:[#allocation2 + $0x118] sm:$0xff]
      %v1009 = vld [vmem:[#allocation2 + $0x120] sm:$0xff]
      %v1010 = vld [vmem:[#allocation2 + $0x128] sm:$0xff]
      %v1011 = vld [vmem:[#allocation2 + $0x130] sm:$0xff]
      %v1012 = vld [vmem:[#allocation2 + $0x138] sm:$0xff]
      %v1013 = vld [vmem:[#allocation2 + $0x140] sm:$0xff]
      %v1014 = vld [vmem:[#allocation2 + $0x148] sm:$0xff]
      %v1015 = vld [vmem:[#allocation2 + $0x150] sm:$0xff]
      %v1016 = vld [vmem:[#allocation2 + $0x158] sm:$0xff]
      %v1017 = vld [vmem:[#allocation2 + $0x160] sm:$0xff]
      %v1018 = vld [vmem:[#allocation2 + $0x168] sm:$0xff]
      %v1019 = vld [vmem:[#allocation2 + $0x170] sm:$0xff]
      %v1020 = vld [vmem:[#allocation2 + $0x178] sm:$0xff]
      %v1021 = vld [vmem:[#allocation2 + $0x180] sm:$0xff]
      %v1022 = vld [vmem:[#allocation2 + $0x188] sm:$0xff]
      %v1023 = vld [vmem:[#allocation2 + $0x190] sm:$0xff]
      %v1024 = vld [vmem:[#allocation2 + $0x198] sm:$0xff]
      %v1025 = vld [vmem:[#allocation2 + $0x1a0] sm:$0xff]
      %v1026 = vld [vmem:[#allocation2 + $0x1a8] sm:$0xff]
      %v1027 = vld [vmem:[#allocation2 + $0x1b0] sm:$0xff]
      %v1028 = vld [vmem:[#allocation2 + $0x1b8] sm:$0xff]
      %v1029 = vld [vmem:[#allocation2 + $0x1c0] sm:$0xff]
      %v1030 = vld [vmem:[#allocation2 + $0x1c8] sm:$0xff]
      %v1031 = vld [vmem:[#allocation2 + $0x1d0] sm:$0xff]
      %v1032 = vld [vmem:[#allocation2 + $0x1d8] sm:$0xff]
      %v1033 = vld [vmem:[#allocation2 + $0x1e0] sm:$0xff]
      %v1034 = vld [vmem:[#allocation2 + $0x1e8] sm:$0xff]
      %v1035 = vld [vmem:[#allocation2 + $0x1f0] sm:$0xff]
      %v1036 = vld [vmem:[#allocation2 + $0x1f8] sm:$0xff]
      %v1037 = vmul.f32 %v973, 0.2
      %v1038 = vmul.f32 %v974, 0.2
      %v1039 = vmul.f32 %v975, 0.2
      %v1040 = vmul.f32 %v976, 0.2
      %v1041 = vmul.f32 %v977, 0.2
      %v1042 = vmul.f32 %v978, 0.2
      %v1043 = vmul.f32 %v979, 0.2
      %v1044 = vmul.f32 %v980, 0.2
      %v1045 = vmul.f32 %v981, 0.2
      %v1046 = vmul.f32 %v982, 0.2
      %v1047 = vmul.f32 %v983, 0.2
      %v1048 = vmul.f32 %v984, 0.2
      %v1049 = vmul.f32 %v985, 0.2
      %v1050 = vmul.f32 %v986, 0.2
      %v1051 = vmul.f32 %v987, 0.2
      %v1052 = vmul.f32 %v988, 0.2
      %v1053 = vmul.f32 %v989, 0.2
      %v1054 = vmul.f32 %v990, 0.2
      %v1055 = vmul.f32 %v991, 0.2
      %v1056 = vmul.f32 %v992, 0.2
      %v1057 = vmul.f32 %v993, 0.2
      %v1058 = vmul.f32 %v994, 0.2
      %v1059 = vmul.f32 %v995, 0.2
      %v1060 = vmul.f32 %v996, 0.2
      %v1061 = vmul.f32 %v997, 0.2
      %v1062 = vmul.f32 %v998, 0.2
      %v1063 = vmul.f32 %v999, 0.2
      %v1064 = vmul.f32 %v1000, 0.2
      %v1065 = vmul.f32 %v1001, 0.2
      %v1066 = vmul.f32 %v1002, 0.2
      %v1067 = vmul.f32 %v1003, 0.2
      %v1068 = vmul.f32 %v1004, 0.2
      %v1069 = vmul.f32 %v1005, 0.2
      %v1070 = vmul.f32 %v1006, 0.2
      %v1071 = vmul.f32 %v1007, 0.2
      %v1072 = vmul.f32 %v1008, 0.2
      %v1073 = vmul.f32 %v1009, 0.2
      %v1074 = vmul.f32 %v1010, 0.2
      %v1075 = vmul.f32 %v1011, 0.2
      %v1076 = vmul.f32 %v1012, 0.2
      %v1077 = vmul.f32 %v1013, 0.2
      %v1078 = vmul.f32 %v1014, 0.2
      %v1079 = vmul.f32 %v1015, 0.2
      %v1080 = vmul.f32 %v1016, 0.2
      %v1081 = vmul.f32 %v1017, 0.2
      %v1082 = vmul.f32 %v1018, 0.2
      %v1083 = vmul.f32 %v1019, 0.2
      %v1084 = vmul.f32 %v1020, 0.2
      %v1085 = vmul.f32 %v1021, 0.2
      %v1086 = vmul.f32 %v1022, 0.2
      %v1087 = vmul.f32 %v1023, 0.2
      %v1088 = vmul.f32 %v1024, 0.2
      %v1089 = vmul.f32 %v1025, 0.2
      %v1090 = vmul.f32 %v1026, 0.2
      %v1091 = vmul.f32 %v1027, 0.2
      %v1092 = vmul.f32 %v1028, 0.2
      %v1093 = vmul.f32 %v1029, 0.2
      %v1094 = vmul.f32 %v1030, 0.2
      %v1095 = vmul.f32 %v1031, 0.2
      %v1096 = vmul.f32 %v1032, 0.2
      %v1097 = vmul.f32 %v1033, 0.2
      %v1098 = vmul.f32 %v1034, 0.2
      %v1099 = vmul.f32 %v1035, 0.2
      %v1100 = vmul.f32 %v1036, 0.2
      %v1101 = vmax.f32 %v973, %v1037
      %v1102 = vmax.f32 %v974, %v1038
      %v1103 = vmax.f32 %v975, %v1039
      %v1104 = vmax.f32 %v976, %v1040
      %v1105 = vmax.f32 %v977, %v1041
      %v1106 = vmax.f32 %v978, %v1042
      %v1107 = vmax.f32 %v979, %v1043
      %v1108 = vmax.f32 %v980, %v1044
      %v1109 = vmax.f32 %v981, %v1045
      %v1110 = vmax.f32 %v982, %v1046
      %v1111 = vmax.f32 %v983, %v1047
      %v1112 = vmax.f32 %v984, %v1048
      %v1113 = vmax.f32 %v985, %v1049
      %v1114 = vmax.f32 %v986, %v1050
      %v1115 = vmax.f32 %v987, %v1051
      %v1116 = vmax.f32 %v988, %v1052
      %v1117 = vmax.f32 %v989, %v1053
      %v1118 = vmax.f32 %v990, %v1054
      %v1119 = vmax.f32 %v991, %v1055
      %v1120 = vmax.f32 %v992, %v1056
      %v1121 = vmax.f32 %v993, %v1057
      %v1122 = vmax.f32 %v994, %v1058
      %v1123 = vmax.f32 %v995, %v1059
      %v1124 = vmax.f32 %v996, %v1060
      %v1125 = vmax.f32 %v997, %v1061
      %v1126 = vmax.f32 %v998, %v1062
      %v1127 = vmax.f32 %v999, %v1063
      %v1128 = vmax.f32 %v1000, %v1064
      %v1129 = vmax.f32 %v1001, %v1065
      %v1130 = vmax.f32 %v1002, %v1066
      %v1131 = vmax.f32 %v1003, %v1067
      %v1132 = vmax.f32 %v1004, %v1068
      %v1133 = vmax.f32 %v1005, %v1069
      %v1134 = vmax.f32 %v1006, %v1070
      %v1135 = vmax.f32 %v1007, %v1071
      %v1136 = vmax.f32 %v1008, %v1072
      %v1137 = vmax.f32 %v1009, %v1073
      %v1138 = vmax.f32 %v1010, %v1074
      %v1139 = vmax.f32 %v1011, %v1075
      %v1140 = vmax.f32 %v1012, %v1076
      %v1141 = vmax.f32 %v1013, %v1077
      %v1142 = vmax.f32 %v1014, %v1078
      %v1143 = vmax.f32 %v1015, %v1079
      %v1144 = vmax.f32 %v1016, %v1080
      %v1145 = vmax.f32 %v1017, %v1081
      %v1146 = vmax.f32 %v1018, %v1082
      %v1147 = vmax.f32 %v1019, %v1083
      %v1148 = vmax.f32 %v1020, %v1084
      %v1149 = vmax.f32 %v1021, %v1085
      %v1150 = vmax.f32 %v1022, %v1086
      %v1151 = vmax.f32 %v1023, %v1087
      %v1152 = vmax.f32 %v1024, %v1088
      %v1153 = vmax.f32 %v1025, %v1089
      %v1154 = vmax.f32 %v1026, %v1090
      %v1155 = vmax.f32 %v1027, %v1091
      %v1156 = vmax.f32 %v1028, %v1092
      %v1157 = vmax.f32 %v1029, %v1093
      %v1158 = vmax.f32 %v1030, %v1094
      %v1159 = vmax.f32 %v1031, %v1095
      %v1160 = vmax.f32 %v1032, %v1096
      %v1161 = vmax.f32 %v1033, %v1097
      %v1162 = vmax.f32 %v1034, %v1098
      %v1163 = vmax.f32 %v1035, %v1099
      %v1164 = vmax.f32 %v1036, %v1100
      %v1165 = vpack.c.bf16 %v1105, %v1101
      %v1166 = vpack.c.bf16 %v1106, %v1102
      %v1167 = vpack.c.bf16 %v1107, %v1103
      %v1168 = vpack.c.bf16 %v1108, %v1104
      %v1169 = vpack.c.bf16 %v1113, %v1109
      %v1170 = vpack.c.bf16 %v1114, %v1110
      %v1171 = vpack.c.bf16 %v1115, %v1111
      %v1172 = vpack.c.bf16 %v1116, %v1112
      %v1173 = vpack.c.bf16 %v1121, %v1117
      %v1174 = vpack.c.bf16 %v1122, %v1118
      %v1175 = vpack.c.bf16 %v1123, %v1119
      %v1176 = vpack.c.bf16 %v1124, %v1120
      %v1177 = vpack.c.bf16 %v1129, %v1125
      %v1178 = vpack.c.bf16 %v1130, %v1126
      %v1179 = vpack.c.bf16 %v1131, %v1127
      %v1180 = vpack.c.bf16 %v1132, %v1128
      %v1181 = vpack.c.bf16 %v1137, %v1133
      %v1182 = vpack.c.bf16 %v1138, %v1134
      %v1183 = vpack.c.bf16 %v1139, %v1135
      %v1184 = vpack.c.bf16 %v1140, %v1136
      %v1185 = vpack.c.bf16 %v1145, %v1141
      %v1186 = vpack.c.bf16 %v1146, %v1142
      %v1187 = vpack.c.bf16 %v1147, %v1143
      %v1188 = vpack.c.bf16 %v1148, %v1144
      %v1189 = vpack.c.bf16 %v1153, %v1149
      %v1190 = vpack.c.bf16 %v1154, %v1150
      %v1191 = vpack.c.bf16 %v1155, %v1151
      %v1192 = vpack.c.bf16 %v1156, %v1152
      %v1193 = vpack.c.bf16 %v1161, %v1157
      %v1194 = vpack.c.bf16 %v1162, %v1158
      %v1195 = vpack.c.bf16 %v1163, %v1159
      %v1196 = vpack.c.bf16 %v1164, %v1160
      %v1229 = vunpack.c.l.b16 %v1165
      %v1230 = vunpack.c.l.b16 %v1166
      %v1231 = vunpack.c.l.b16 %v1167
      %v1232 = vunpack.c.l.b16 %v1168
      %v1233 = vunpack.c.h.b16 %v1165
      %v1234 = vunpack.c.h.b16 %v1166
      %v1235 = vunpack.c.h.b16 %v1167
      %v1236 = vunpack.c.h.b16 %v1168
      %v1237 = vunpack.c.l.b16 %v1169
      %v1238 = vunpack.c.l.b16 %v1170
      %v1239 = vunpack.c.l.b16 %v1171
      %v1240 = vunpack.c.l.b16 %v1172
      %v1241 = vunpack.c.h.b16 %v1169
      %v1242 = vunpack.c.h.b16 %v1170
      %v1243 = vunpack.c.h.b16 %v1171
      %v1244 = vunpack.c.h.b16 %v1172
      %v1245 = vunpack.c.l.b16 %v1173
      %v1246 = vunpack.c.l.b16 %v1174
      %v1247 = vunpack.c.l.b16 %v1175
      %v1248 = vunpack.c.l.b16 %v1176
      %v1249 = vunpack.c.h.b16 %v1173
      %v1250 = vunpack.c.h.b16 %v1174
      %v1251 = vunpack.c.h.b16 %v1175
      %v1252 = vunpack.c.h.b16 %v1176
      %v1253 = vunpack.c.l.b16 %v1177
      %v1254 = vunpack.c.l.b16 %v1178
      %v1255 = vunpack.c.l.b16 %v1179
      %v1256 = vunpack.c.l.b16 %v1180
      %v1257 = vunpack.c.h.b16 %v1177
      %v1258 = vunpack.c.h.b16 %v1178
      %v1259 = vunpack.c.h.b16 %v1179
      %v1260 = vunpack.c.h.b16 %v1180
      %v1261 = vunpack.c.l.b16 %v1181
      %v1262 = vunpack.c.l.b16 %v1182
      %v1263 = vunpack.c.l.b16 %v1183
      %v1264 = vunpack.c.l.b16 %v1184
      %v1265 = vunpack.c.h.b16 %v1181
      %v1266 = vunpack.c.h.b16 %v1182
      %v1267 = vunpack.c.h.b16 %v1183
      %v1268 = vunpack.c.h.b16 %v1184
      %v1269 = vunpack.c.l.b16 %v1185
      %v1270 = vunpack.c.l.b16 %v1186
      %v1271 = vunpack.c.l.b16 %v1187
      %v1272 = vunpack.c.l.b16 %v1188
      %v1273 = vunpack.c.h.b16 %v1185
      %v1274 = vunpack.c.h.b16 %v1186
      %v1275 = vunpack.c.h.b16 %v1187
      %v1276 = vunpack.c.h.b16 %v1188
      %v1277 = vunpack.c.l.b16 %v1189
      %v1278 = vunpack.c.l.b16 %v1190
      %v1279 = vunpack.c.l.b16 %v1191
      %v1280 = vunpack.c.l.b16 %v1192
      %v1281 = vunpack.c.h.b16 %v1189
      %v1282 = vunpack.c.h.b16 %v1190
      %v1283 = vunpack.c.h.b16 %v1191
      %v1284 = vunpack.c.h.b16 %v1192
      %v1285 = vunpack.c.l.b16 %v1193
      %v1286 = vunpack.c.l.b16 %v1194
      %v1287 = vunpack.c.l.b16 %v1195
      %v1288 = vunpack.c.l.b16 %v1196
      %v1289 = vunpack.c.h.b16 %v1193
      %v1290 = vunpack.c.h.b16 %v1194
      %v1291 = vunpack.c.h.b16 %v1195
      %v1292 = vunpack.c.h.b16 %v1196
      %v1293 = vpack.c.b16 %v1230, %v1229
      %v1294 = vpack.c.b16 %v1232, %v1231
      %v1295 = vpack.c.b16 %v1234, %v1233
      %v1296 = vpack.c.b16 %v1236, %v1235
      %v1297 = vpack.c.b16 %v1238, %v1237
      %v1298 = vpack.c.b16 %v1240, %v1239
      %v1299 = vpack.c.b16 %v1242, %v1241
      %v1300 = vpack.c.b16 %v1244, %v1243
      %v1301 = vpack.c.b16 %v1246, %v1245
      %v1302 = vpack.c.b16 %v1248, %v1247
      %v1303 = vpack.c.b16 %v1250, %v1249
      %v1304 = vpack.c.b16 %v1252, %v1251
      %v1305 = vpack.c.b16 %v1254, %v1253
      %v1306 = vpack.c.b16 %v1256, %v1255
      %v1307 = vpack.c.b16 %v1258, %v1257
      %v1308 = vpack.c.b16 %v1260, %v1259
      %v1309 = vpack.c.b16 %v1262, %v1261
      %v1310 = vpack.c.b16 %v1264, %v1263
      %v1311 = vpack.c.b16 %v1266, %v1265
      %v1312 = vpack.c.b16 %v1268, %v1267
      %v1313 = vpack.c.b16 %v1270, %v1269
      %v1314 = vpack.c.b16 %v1272, %v1271
      %v1315 = vpack.c.b16 %v1274, %v1273
      %v1316 = vpack.c.b16 %v1276, %v1275
      %v1317 = vpack.c.b16 %v1278, %v1277
      %v1318 = vpack.c.b16 %v1280, %v1279
      %v1319 = vpack.c.b16 %v1282, %v1281
      %v1320 = vpack.c.b16 %v1284, %v1283
      %v1321 = vpack.c.b16 %v1286, %v1285
      %v1322 = vpack.c.b16 %v1288, %v1287
      %v1323 = vpack.c.b16 %v1290, %v1289
      %v1324 = vpack.c.b16 %v1292, %v1291
      %1357 = vst [vmem:[#allocation3] sm:$0xff] %v1293
      %1358 = vst [vmem:[#allocation3 + $0x8] sm:$0xff] %v1294
      %1359 = vst [vmem:[#allocation3 + $0x10] sm:$0xff] %v1295
      %1360 = vst [vmem:[#allocation3 + $0x18] sm:$0xff] %v1296
      %1361 = vst [vmem:[#allocation3 + $0x20] sm:$0xff] %v1297
      %1362 = vst [vmem:[#allocation3 + $0x28] sm:$0xff] %v1298
      %1363 = vst [vmem:[#allocation3 + $0x30] sm:$0xff] %v1299
      %1364 = vst [vmem:[#allocation3 + $0x38] sm:$0xff] %v1300
      %1365 = vst [vmem:[#allocation3 + $0x40] sm:$0xff] %v1301
      %1366 = vst [vmem:[#allocation3 + $0x48] sm:$0xff] %v1302
      %1367 = vst [vmem:[#allocation3 + $0x50] sm:$0xff] %v1303
      %1368 = vst [vmem:[#allocation3 + $0x58] sm:$0xff] %v1304
      %1369 = vst [vmem:[#allocation3 + $0x60] sm:$0xff] %v1305
      %1370 = vst [vmem:[#allocation3 + $0x68] sm:$0xff] %v1306
      %1371 = vst [vmem:[#allocation3 + $0x70] sm:$0xff] %v1307
      %1372 = vst [vmem:[#allocation3 + $0x78] sm:$0xff] %v1308
      %1373 = vst [vmem:[#allocation3 + $0x80] sm:$0xff] %v1309
      %1374 = vst [vmem:[#allocation3 + $0x88] sm:$0xff] %v1310
      %1375 = vst [vmem:[#allocation3 + $0x90] sm:$0xff] %v1311
      %1376 = vst [vmem:[#allocation3 + $0x98] sm:$0xff] %v1312
      %1377 = vst [vmem:[#allocation3 + $0xa0] sm:$0xff] %v1313
      %1378 = vst [vmem:[#allocation3 + $0xa8] sm:$0xff] %v1314
      %1379 = vst [vmem:[#allocation3 + $0xb0] sm:$0xff] %v1315
      %1380 = vst [vmem:[#allocation3 + $0xb8] sm:$0xff] %v1316
      %1381 = vst [vmem:[#allocation3 + $0xc0] sm:$0xff] %v1317
      %1382 = vst [vmem:[#allocation3 + $0xc8] sm:$0xff] %v1318
      %1383 = vst [vmem:[#allocation3 + $0xd0] sm:$0xff] %v1319
      %1384 = vst [vmem:[#allocation3 + $0xd8] sm:$0xff] %v1320
      %1385 = vst [vmem:[#allocation3 + $0xe0] sm:$0xff] %v1321
      %1386 = vst [vmem:[#allocation3 + $0xe8] sm:$0xff] %v1322
      %1387 = vst [vmem:[#allocation3 + $0xf0] sm:$0xff] %v1323
      %1388 = vst [vmem:[#allocation3 + $0xf8] sm:$0xff] %v1324
    $region21: #{tpu_custom_call.1} parent=1 // pred_fallthru
      _
    // Predicated region
    $region22: #{tpu_custom_call.1} parent=1 // pred_check
      _
    $region23: #{tpu_custom_call.1} parent=1 // pred_check_branch
      %1390 = sbr.rel (0) target = $region25
    $region24: #{tpu_custom_call.1} parent=1 // pred_region
      %s1392 = ssub.s32 4096, 4096
      %1393 = vsyncadd [#allocation4], %s1392
      %s1394 = sshll.u32 [#allocation3], 4
      %s1395 = int_to_ptr.vmem [resolvable:$true] %s1394
      %1400 = dma.vmem_to_hbm [thread:$0]  %s1395, 4096, %s3, [#allocation4], 256, 256, 16
    $region25: #{tpu_custom_call.1} parent=1 // pred_fallthru
      _
    // Predicated region
    $region26: #{tpu_custom_call.1} parent=1 // pred_check
      _
    $region27: #{tpu_custom_call.1} parent=1 // pred_check_branch
      %1402 = sbr.rel (0) target = $region29
    $region28: #{tpu_custom_call.1} parent=1 // pred_region
      %1403 = dma.done [#allocation4], 4096
    $region29: #{tpu_custom_call.1} parent=1 // pred_fallthru
      _
    %1404 = vsyncpa [#allocation4], 1

</llo_original>
